<compile_context>
chip_gen: v5e
topology: v5e:2x2
jax: 0.10.0
libtpu: 0.0.40
codegen_flags: <defaults>
</compile_context>

<pallas_src>
import functools

import jax
import jax.numpy as jnp
from jax.experimental import pallas as pl
from jax.experimental.pallas import tpu as pltpu

L = 34            # sequence length implied by out_dim = 32 * 34
LP = 40           # padded sequence length (multiple of 8 -> tile-aligned folds)
C_IN = 18
C_MID = 64
C_OUT = 32


def _conv_block(src_ref, w_ref, b_ref, mask=None):
    """One Conv1d(k=3,p=1)+ReLU layer on the flat padded activation scratch.

    src_ref: (N+2, Cin) with row 0 / row N+1 zero (global pad) and per-element
             pad rows (l >= 34) zero.  w_ref: (3*Cin, Cout) tap-fused weights.
    Returns (N, Cout).
    """
    n = src_ref.shape[0] - 2
    s = src_ref[...]
    # Shifted windows: rows r, r+1, r+2 of the padded buffer are h[l-1], h[l],
    # h[l+1] for output row r.  Fuse the 3 taps along channels -> one matmul.
    lhs = jnp.concatenate([s[0:n, :], s[1:n + 1, :], s[2:n + 2, :]], axis=1)
    y = jnp.dot(lhs, w_ref[...], preferred_element_type=jnp.float32)
    y = jnp.maximum(y + b_ref[...], 0.0)          # bias (1, Cout) broadcasts
    if mask is not None:
        y = y * mask                              # re-zero per-element pad rows
    return y


def self_info_encoder_kernel(x_ref,
                             w1_ref, b1_ref, w2_ref, b2_ref,
                             w3_ref, b3_ref, w4_ref, b4_ref,
                             o_ref,
                             xs_ref, x1_ref, ha_ref, hb_ref):
    TB = x_ref.shape[0]
    N = TB * LP

    # Zero only the pad regions (a few KB), every step.  Done every step (not
    # under program_id==0) so iterations are independent -> "parallel" axis OK.
    xs_ref[:, L:, :] = jnp.zeros((TB, LP - L, C_IN), jnp.float32)
    x1_ref[0:1, :] = jnp.zeros((1, C_IN), jnp.float32)
    x1_ref[N + 1:N + 2, :] = jnp.zeros((1, C_IN), jnp.float32)
    ha_ref[0:1, :] = jnp.zeros((1, C_MID), jnp.float32)
    ha_ref[N + 1:N + 2, :] = jnp.zeros((1, C_MID), jnp.float32)
    hb_ref[0:1, :] = jnp.zeros((1, C_MID), jnp.float32)
    hb_ref[N + 1:N + 2, :] = jnp.zeros((1, C_MID), jnp.float32)

    # Stage the unpadded (TB, 34, 18) block into the seq-padded scratch, then
    # flatten (tile-aligned since LP % 8 == 0) into the +2-row padded buffer.
    xs_ref[:, :L, :] = x_ref[...]
    x1_ref[1:N + 1, :] = xs_ref[...].reshape(N, C_IN)

    # Mask that zeroes the per-element pad rows (l >= 34) of intermediate
    # activations so the shifted taps of the next layer read zeros there.
    lidx = jax.lax.broadcasted_iota(jnp.int32, (TB, LP, C_MID), 1)
    mask = (lidx < L).astype(jnp.float32).reshape(N, C_MID)

    ha_ref[1:N + 1, :] = _conv_block(x1_ref, w1_ref, b1_ref, mask)
    hb_ref[1:N + 1, :] = _conv_block(ha_ref, w2_ref, b2_ref, mask)
    ha_ref[1:N + 1, :] = _conv_block(hb_ref, w3_ref, b3_ref, mask)
    y = _conv_block(ha_ref, w4_ref, b4_ref)            # (N, 32); pad rows junk

    # Channel-major output (matches nn.Flatten on NCL): transpose in-kernel so
    # the host only needs a free contiguous reshape (B, 32, 34) -> (B, 1088).
    y3 = y.reshape(TB, LP, C_OUT)                      # tile-aligned unfold
    o_ref[...] = jnp.swapaxes(y3, 1, 2)[:, :, :L]      # (TB, 32, 34)


def self_info_encoder(x, params, block_b=64):
    """x: (B, L=34, C=18) float32. Returns (B, 32*34) matching PyTorch Flatten."""
    B = x.shape[0]
    TB = min(block_b, B)
    G = -(-B // TB)                 # cdiv
    Bp = G * TB
    if Bp != B:                     # only for ragged batches
        x = jnp.pad(x, ((0, Bp - B), (0, 0), (0, 0)))

    (w1, b1), (w2, b2), (w3, b3), (w4, b4) = params
    N = TB * LP

    def full_spec(a):
        return pl.BlockSpec(a.shape, lambda i, nd=a.ndim: (0,) * nd)

    out = pl.pallas_call(
        self_info_encoder_kernel,
        out_shape=jax.ShapeDtypeStruct((Bp, C_OUT, L), jnp.float32),
        grid_spec=pltpu.PrefetchScalarGridSpec(
            num_scalar_prefetch=0,
            grid=(G,),
            in_specs=[
                pl.BlockSpec((TB, L, C_IN), lambda i: (i, 0, 0)),
                full_spec(w1), full_spec(b1),
                full_spec(w2), full_spec(b2),
                full_spec(w3), full_spec(b3),
                full_spec(w4), full_spec(b4),
            ],
            out_specs=pl.BlockSpec((TB, C_OUT, L), lambda i: (i, 0, 0)),
            scratch_shapes=[
                pltpu.VMEM((TB, LP, C_IN), jnp.float32),      # seq-padded input
                pltpu.VMEM((N + 2, C_IN), jnp.float32),       # flat padded x
                pltpu.VMEM((N + 2, C_MID), jnp.float32),      # ping
                pltpu.VMEM((N + 2, C_MID), jnp.float32),      # pong
            ],
        ),
        compiler_params=pltpu.CompilerParams(
            dimension_semantics=("parallel",),
            vmem_limit_bytes=48 * 1024 * 1024,   # fits v7x's 64 MiB physical VMEM
        ),
    )(x, w1, b1, w2, b2, w3, b3, w4, b4)

    # (Bp, 32, 34) -> (B, 1088): contiguous-dim merge, effectively free in XLA.
    return out[:B].reshape(B, C_OUT * L)


def make_params(key):
    """Deterministic synthetic parameters.
    PyTorch layout: W (Cout, Cin, 3), b (Cout,).
    Kernel layout (tap-fused): W (3*Cin, Cout) with row t*Cin + ci = W_pt[:, ci, t];
    b (1, Cout)."""
    shapes = [(C_MID, C_IN), (C_MID, C_MID), (C_MID, C_MID), (C_OUT, C_MID)]
    pt_params, k_params = [], []
    for (cout, cin) in shapes:
        key, kw, kb = jax.random.split(key, 3)
        w = jax.random.normal(kw, (cout, cin, 3), jnp.float32) * 0.1
        b = jax.random.normal(kb, (cout,), jnp.float32) * 0.1
        pt_params.append((w, b))
        wk = jnp.transpose(w, (2, 1, 0)).reshape(3 * cin, cout)
        k_params.append((wk, b[None, :]))
    return pt_params, k_params


def reference_forward(x, pt_params):
    """Pure-JAX emulation of the PyTorch module (NCL conv1d chain)."""
    h = jnp.transpose(x, (0, 2, 1))              # (B, 18, 34)
    for (w, b) in pt_params:
        h = jax.lax.conv_general_dilated(
            h, w, window_strides=(1,), padding=[(1, 1)],
            dimension_numbers=("NCH", "OIH", "NCH"))
        h = jnp.maximum(h + b[None, :, None], 0.0)
    return h.reshape(h.shape[0], -1)             # Flatten over (32, 34)


if __name__ == "__main__":
    key = jax.random.PRNGKey(0)
    key, kx = jax.random.split(key)
    B = 8
    x = jax.random.normal(kx, (B, L, C_IN), jnp.float32)

    pt_params, k_params = make_params(key)

    # block_b=4 -> grid of 2 steps; exercises multi-step scratch reuse.
    run = jax.jit(functools.partial(self_info_encoder, params=k_params,
                                    block_b=4))
    y = jax.block_until_ready(run(x))

    y_ref = reference_forward(x, pt_params)
    assert y.shape == (B, C_OUT * L), y.shape
    max_err = float(jnp.max(jnp.abs(y - y_ref)))
    assert jnp.allclose(y, y_ref, atol=2e-4, rtol=2e-4), max_err

    print("KERNEL_OK")
</pallas_src>

<mosaic_0001>
module attributes {stable_mosaic.version = 11 : i64} {
  func.func @self_info_encoder_kernel(%arg0: i32, %arg1: memref<4x34x18xf32, #tpu.memory_space<vmem>>, %arg2: memref<54x64xf32, #tpu.memory_space<vmem>>, %arg3: memref<1x64xf32, #tpu.memory_space<vmem>>, %arg4: memref<192x64xf32, #tpu.memory_space<vmem>>, %arg5: memref<1x64xf32, #tpu.memory_space<vmem>>, %arg6: memref<192x64xf32, #tpu.memory_space<vmem>>, %arg7: memref<1x64xf32, #tpu.memory_space<vmem>>, %arg8: memref<192x32xf32, #tpu.memory_space<vmem>>, %arg9: memref<1x32xf32, #tpu.memory_space<vmem>>, %arg10: memref<4x32x34xf32, #tpu.memory_space<vmem>>, %arg11: memref<4x40x18xf32, #tpu.memory_space<vmem>>, %arg12: memref<162x18xf32, #tpu.memory_space<vmem>>, %arg13: memref<162x64xf32, #tpu.memory_space<vmem>>, %arg14: memref<162x64xf32, #tpu.memory_space<vmem>>) attributes {dimension_semantics = [#tpu.dimension_semantics<parallel>], iteration_bounds = array<i64: 2>, scalar_prefetch = 0 : i64, scratch_operands = 4 : i64, tpu.core_type = #tpu.core_type<tc>, window_params = [{transform_indices = @transform_0, window_bounds = array<i64: 4, 34, 18>}, {pipeline_mode = #tpu.pipeline_mode<synchronous>, transform_indices = @transform_1, window_bounds = array<i64: 54, 64>}, {pipeline_mode = #tpu.pipeline_mode<synchronous>, transform_indices = @transform_2, window_bounds = array<i64: 1, 64>}, {pipeline_mode = #tpu.pipeline_mode<synchronous>, transform_indices = @transform_3, window_bounds = array<i64: 192, 64>}, {pipeline_mode = #tpu.pipeline_mode<synchronous>, transform_indices = @transform_4, window_bounds = array<i64: 1, 64>}, {pipeline_mode = #tpu.pipeline_mode<synchronous>, transform_indices = @transform_5, window_bounds = array<i64: 192, 64>}, {pipeline_mode = #tpu.pipeline_mode<synchronous>, transform_indices = @transform_6, window_bounds = array<i64: 1, 64>}, {pipeline_mode = #tpu.pipeline_mode<synchronous>, transform_indices = @transform_7, window_bounds = array<i64: 192, 32>}, {pipeline_mode = #tpu.pipeline_mode<synchronous>, transform_indices = @transform_8, window_bounds = array<i64: 1, 32>}, {transform_indices = @transform_9, window_bounds = array<i64: 4, 32, 34>}]} {
    %cst = arith.constant 0.000000e+00 : f32
    %0 = vector.broadcast %cst : f32 to vector<4x6x18xf32>
    %c0 = arith.constant 0 : index
    %c34 = arith.constant 34 : index
    %c0_0 = arith.constant 0 : index
    %1 = vector.load %arg11[%c0, %c34, %c0_0] : memref<4x40x18xf32, #tpu.memory_space<vmem>>, vector<4x6x18xf32>
    tpu.vector_store %arg11[%c0, %c34, %c0_0], %0 {strides = array<i32>} : memref<4x40x18xf32, #tpu.memory_space<vmem>>, vector<4x6x18xf32>,
    %cst_1 = arith.constant 0.000000e+00 : f32
    %2 = vector.broadcast %cst_1 : f32 to vector<1x18xf32>
    %c0_2 = arith.constant 0 : index
    %c0_3 = arith.constant 0 : index
    %3 = vector.load %arg12[%c0_2, %c0_3] : memref<162x18xf32, #tpu.memory_space<vmem>>, vector<1x18xf32>
    tpu.vector_store %arg12[%c0_2, %c0_3], %2 {strides = array<i32>} : memref<162x18xf32, #tpu.memory_space<vmem>>, vector<1x18xf32>,
    %cst_4 = arith.constant 0.000000e+00 : f32
    %4 = vector.broadcast %cst_4 : f32 to vector<1x18xf32>
    %c161 = arith.constant 161 : index
    %c0_5 = arith.constant 0 : index
    %5 = vector.load %arg12[%c161, %c0_5] : memref<162x18xf32, #tpu.memory_space<vmem>>, vector<1x18xf32>
    tpu.vector_store %arg12[%c161, %c0_5], %4 {strides = array<i32>} : memref<162x18xf32, #tpu.memory_space<vmem>>, vector<1x18xf32>,
    %cst_6 = arith.constant 0.000000e+00 : f32
    %6 = vector.broadcast %cst_6 : f32 to vector<1x64xf32>
    %c0_7 = arith.constant 0 : index
    %c0_8 = arith.constant 0 : index
    %7 = vector.load %arg13[%c0_7, %c0_8] : memref<162x64xf32, #tpu.memory_space<vmem>>, vector<1x64xf32>
    tpu.vector_store %arg13[%c0_7, %c0_8], %6 {strides = array<i32>} : memref<162x64xf32, #tpu.memory_space<vmem>>, vector<1x64xf32>,
    %cst_9 = arith.constant 0.000000e+00 : f32
    %8 = vector.broadcast %cst_9 : f32 to vector<1x64xf32>
    %c161_10 = arith.constant 161 : index
    %c0_11 = arith.constant 0 : index
    %9 = vector.load %arg13[%c161_10, %c0_11] : memref<162x64xf32, #tpu.memory_space<vmem>>, vector<1x64xf32>
    tpu.vector_store %arg13[%c161_10, %c0_11], %8 {strides = array<i32>} : memref<162x64xf32, #tpu.memory_space<vmem>>, vector<1x64xf32>,
    %cst_12 = arith.constant 0.000000e+00 : f32
    %10 = vector.broadcast %cst_12 : f32 to vector<1x64xf32>
    %c0_13 = arith.constant 0 : index
    %c0_14 = arith.constant 0 : index
    %11 = vector.load %arg14[%c0_13, %c0_14] : memref<162x64xf32, #tpu.memory_space<vmem>>, vector<1x64xf32>
    tpu.vector_store %arg14[%c0_13, %c0_14], %10 {strides = array<i32>} : memref<162x64xf32, #tpu.memory_space<vmem>>, vector<1x64xf32>,
    %cst_15 = arith.constant 0.000000e+00 : f32
    %12 = vector.broadcast %cst_15 : f32 to vector<1x64xf32>
    %c161_16 = arith.constant 161 : index
    %c0_17 = arith.constant 0 : index
    %13 = vector.load %arg14[%c161_16, %c0_17] : memref<162x64xf32, #tpu.memory_space<vmem>>, vector<1x64xf32>
    tpu.vector_store %arg14[%c161_16, %c0_17], %12 {strides = array<i32>} : memref<162x64xf32, #tpu.memory_space<vmem>>, vector<1x64xf32>,
    %c0_18 = arith.constant 0 : index
    %c0_19 = arith.constant 0 : index
    %c0_20 = arith.constant 0 : index
    %14 = vector.load %arg1[%c0_18, %c0_19, %c0_20] : memref<4x34x18xf32, #tpu.memory_space<vmem>>, vector<4x34x18xf32>
    %c0_21 = arith.constant 0 : index
    %c0_22 = arith.constant 0 : index
    %c0_23 = arith.constant 0 : index
    %15 = vector.load %arg11[%c0_21, %c0_22, %c0_23] : memref<4x40x18xf32, #tpu.memory_space<vmem>>, vector<4x34x18xf32>
    tpu.vector_store %arg11[%c0_21, %c0_22, %c0_23], %14 {strides = array<i32>} : memref<4x40x18xf32, #tpu.memory_space<vmem>>, vector<4x34x18xf32>,
    %c0_24 = arith.constant 0 : index
    %c0_25 = arith.constant 0 : index
    %c0_26 = arith.constant 0 : index
    %16 = vector.load %arg11[%c0_24, %c0_25, %c0_26] : memref<4x40x18xf32, #tpu.memory_space<vmem>>, vector<4x40x18xf32>
    %17 = vector.shape_cast %16 : vector<4x40x18xf32> to vector<160x18xf32>
    %c1 = arith.constant 1 : index
    %c0_27 = arith.constant 0 : index
    %18 = vector.load %arg12[%c1, %c0_27] : memref<162x18xf32, #tpu.memory_space<vmem>>, vector<160x18xf32>
    tpu.vector_store %arg12[%c1, %c0_27], %17 {strides = array<i32>} : memref<162x18xf32, #tpu.memory_space<vmem>>, vector<160x18xf32>,
    %19 = tpu.iota {dimensions = array<i32: 1>} : vector<4x40x64xi32>
    %c34_i32 = arith.constant 34 : i32
    %20 = vector.broadcast %c34_i32 : i32 to vector<4x40x64xi32>
    %21 = arith.cmpi slt, %19, %20 : vector<4x40x64xi32>
    %22 = arith.extui %21 : vector<4x40x64xi1> to vector<4x40x64xi32>
    %23 = arith.sitofp %22 : vector<4x40x64xi32> to vector<4x40x64xf32>
    %24 = vector.shape_cast %23 : vector<4x40x64xf32> to vector<160x64xf32>
    %c0_28 = arith.constant 0 : index
    %c0_29 = arith.constant 0 : index
    %25 = vector.load %arg12[%c0_28, %c0_29] : memref<162x18xf32, #tpu.memory_space<vmem>>, vector<162x18xf32>
    %26 = vector.extract_strided_slice %25 {offsets = [0, 0], sizes = [160, 18], strides = [1, 1]} : vector<162x18xf32> to vector<160x18xf32>
    %27 = vector.extract_strided_slice %25 {offsets = [1, 0], sizes = [160, 18], strides = [1, 1]} : vector<162x18xf32> to vector<160x18xf32>
    %28 = vector.extract_strided_slice %25 {offsets = [2, 0], sizes = [160, 18], strides = [1, 1]} : vector<162x18xf32> to vector<160x18xf32>
    %29 = tpu.concatenate %26, %27, %28 in 1 : vector<160x18xf32>, vector<160x18xf32>, vector<160x18xf32> -> vector<160x54xf32>
    %c0_30 = arith.constant 0 : index
    %c0_31 = arith.constant 0 : index
    %30 = vector.load %arg2[%c0_30, %c0_31] : memref<54x64xf32, #tpu.memory_space<vmem>>, vector<54x64xf32>
    %cst_32 = arith.constant dense<0.000000e+00> : vector<160x64xf32>
    %31 = tpu.matmul %29, %30, %cst_32 {dimension_numbers = #tpu.dot_dimension_numbers<[1], [0], [0], [1], [0, 0, 1, 1], [], []>} : vector<160x54xf32>, vector<54x64xf32>, vector<160x64xf32> -> vector<160x64xf32>
    %c0_33 = arith.constant 0 : index
    %c0_34 = arith.constant 0 : index
    %32 = vector.load %arg3[%c0_33, %c0_34] : memref<1x64xf32, #tpu.memory_space<vmem>>, vector<1x64xf32>
    %33 = vector.broadcast %32 : vector<1x64xf32> to vector<160x64xf32>
    %34 = arith.addf %31, %33 : vector<160x64xf32>
    %cst_35 = arith.constant 0.000000e+00 : f32
    %35 = vector.broadcast %cst_35 : f32 to vector<160x64xf32>
    %36 = arith.maximumf %34, %35 : vector<160x64xf32>
    %37 = arith.mulf %36, %24 : vector<160x64xf32>
    %c1_36 = arith.constant 1 : index
    %c0_37 = arith.constant 0 : index
    %38 = vector.load %arg13[%c1_36, %c0_37] : memref<162x64xf32, #tpu.memory_space<vmem>>, vector<160x64xf32>
    tpu.vector_store %arg13[%c1_36, %c0_37], %37 {strides = array<i32>} : memref<162x64xf32, #tpu.memory_space<vmem>>, vector<160x64xf32>,
    %c0_38 = arith.constant 0 : index
    %c0_39 = arith.constant 0 : index
    %39 = vector.load %arg13[%c0_38, %c0_39] : memref<162x64xf32, #tpu.memory_space<vmem>>, vector<162x64xf32>
    %40 = vector.extract_strided_slice %39 {offsets = [0, 0], sizes = [160, 64], strides = [1, 1]} : vector<162x64xf32> to vector<160x64xf32>
    %41 = vector.extract_strided_slice %39 {offsets = [1, 0], sizes = [160, 64], strides = [1, 1]} : vector<162x64xf32> to vector<160x64xf32>
    %42 = vector.extract_strided_slice %39 {offsets = [2, 0], sizes = [160, 64], strides = [1, 1]} : vector<162x64xf32> to vector<160x64xf32>
    %43 = tpu.concatenate %40, %41, %42 in 1 : vector<160x64xf32>, vector<160x64xf32>, vector<160x64xf32> -> vector<160x192xf32>
    %c0_40 = arith.constant 0 : index
    %c0_41 = arith.constant 0 : index
    %44 = vector.load %arg4[%c0_40, %c0_41] : memref<192x64xf32, #tpu.memory_space<vmem>>, vector<192x64xf32>
    %cst_42 = arith.constant dense<0.000000e+00> : vector<160x64xf32>
    %45 = tpu.matmul %43, %44, %cst_42 {dimension_numbers = #tpu.dot_dimension_numbers<[1], [0], [0], [1], [0, 0, 1, 1], [], []>} : vector<160x192xf32>, vector<192x64xf32>, vector<160x64xf32> -> vector<160x64xf32>
    %c0_43 = arith.constant 0 : index
    %c0_44 = arith.constant 0 : index
    %46 = vector.load %arg5[%c0_43, %c0_44] : memref<1x64xf32, #tpu.memory_space<vmem>>, vector<1x64xf32>
    %47 = vector.broadcast %46 : vector<1x64xf32> to vector<160x64xf32>
    %48 = arith.addf %45, %47 : vector<160x64xf32>
    %cst_45 = arith.constant 0.000000e+00 : f32
    %49 = vector.broadcast %cst_45 : f32 to vector<160x64xf32>
    %50 = arith.maximumf %48, %49 : vector<160x64xf32>
    %51 = arith.mulf %50, %24 : vector<160x64xf32>
    %c1_46 = arith.constant 1 : index
    %c0_47 = arith.constant 0 : index
    %52 = vector.load %arg14[%c1_46, %c0_47] : memref<162x64xf32, #tpu.memory_space<vmem>>, vector<160x64xf32>
    tpu.vector_store %arg14[%c1_46, %c0_47], %51 {strides = array<i32>} : memref<162x64xf32, #tpu.memory_space<vmem>>, vector<160x64xf32>,
    %c0_48 = arith.constant 0 : index
    %c0_49 = arith.constant 0 : index
    %53 = vector.load %arg14[%c0_48, %c0_49] : memref<162x64xf32, #tpu.memory_space<vmem>>, vector<162x64xf32>
    %54 = vector.extract_strided_slice %53 {offsets = [0, 0], sizes = [160, 64], strides = [1, 1]} : vector<162x64xf32> to vector<160x64xf32>
    %55 = vector.extract_strided_slice %53 {offsets = [1, 0], sizes = [160, 64], strides = [1, 1]} : vector<162x64xf32> to vector<160x64xf32>
    %56 = vector.extract_strided_slice %53 {offsets = [2, 0], sizes = [160, 64], strides = [1, 1]} : vector<162x64xf32> to vector<160x64xf32>
    %57 = tpu.concatenate %54, %55, %56 in 1 : vector<160x64xf32>, vector<160x64xf32>, vector<160x64xf32> -> vector<160x192xf32>
    %c0_50 = arith.constant 0 : index
    %c0_51 = arith.constant 0 : index
    %58 = vector.load %arg6[%c0_50, %c0_51] : memref<192x64xf32, #tpu.memory_space<vmem>>, vector<192x64xf32>
    %cst_52 = arith.constant dense<0.000000e+00> : vector<160x64xf32>
    %59 = tpu.matmul %57, %58, %cst_52 {dimension_numbers = #tpu.dot_dimension_numbers<[1], [0], [0], [1], [0, 0, 1, 1], [], []>} : vector<160x192xf32>, vector<192x64xf32>, vector<160x64xf32> -> vector<160x64xf32>
    %c0_53 = arith.constant 0 : index
    %c0_54 = arith.constant 0 : index
    %60 = vector.load %arg7[%c0_53, %c0_54] : memref<1x64xf32, #tpu.memory_space<vmem>>, vector<1x64xf32>
    %61 = vector.broadcast %60 : vector<1x64xf32> to vector<160x64xf32>
    %62 = arith.addf %59, %61 : vector<160x64xf32>
    %cst_55 = arith.constant 0.000000e+00 : f32
    %63 = vector.broadcast %cst_55 : f32 to vector<160x64xf32>
    %64 = arith.maximumf %62, %63 : vector<160x64xf32>
    %65 = arith.mulf %64, %24 : vector<160x64xf32>
    %c1_56 = arith.constant 1 : index
    %c0_57 = arith.constant 0 : index
    %66 = vector.load %arg13[%c1_56, %c0_57] : memref<162x64xf32, #tpu.memory_space<vmem>>, vector<160x64xf32>
    tpu.vector_store %arg13[%c1_56, %c0_57], %65 {strides = array<i32>} : memref<162x64xf32, #tpu.memory_space<vmem>>, vector<160x64xf32>,
    %c0_58 = arith.constant 0 : index
    %c0_59 = arith.constant 0 : index
    %67 = vector.load %arg13[%c0_58, %c0_59] : memref<162x64xf32, #tpu.memory_space<vmem>>, vector<162x64xf32>
    %68 = vector.extract_strided_slice %67 {offsets = [0, 0], sizes = [160, 64], strides = [1, 1]} : vector<162x64xf32> to vector<160x64xf32>
    %69 = vector.extract_strided_slice %67 {offsets = [1, 0], sizes = [160, 64], strides = [1, 1]} : vector<162x64xf32> to vector<160x64xf32>
    %70 = vector.extract_strided_slice %67 {offsets = [2, 0], sizes = [160, 64], strides = [1, 1]} : vector<162x64xf32> to vector<160x64xf32>
    %71 = tpu.concatenate %68, %69, %70 in 1 : vector<160x64xf32>, vector<160x64xf32>, vector<160x64xf32> -> vector<160x192xf32>
    %c0_60 = arith.constant 0 : index
    %c0_61 = arith.constant 0 : index
    %72 = vector.load %arg8[%c0_60, %c0_61] : memref<192x32xf32, #tpu.memory_space<vmem>>, vector<192x32xf32>
    %cst_62 = arith.constant dense<0.000000e+00> : vector<160x32xf32>
    %73 = tpu.matmul %71, %72, %cst_62 {dimension_numbers = #tpu.dot_dimension_numbers<[1], [0], [0], [1], [0, 0, 1, 1], [], []>} : vector<160x192xf32>, vector<192x32xf32>, vector<160x32xf32> -> vector<160x32xf32>
    %c0_63 = arith.constant 0 : index
    %c0_64 = arith.constant 0 : index
    %74 = vector.load %arg9[%c0_63, %c0_64] : memref<1x32xf32, #tpu.memory_space<vmem>>, vector<1x32xf32>
    %75 = vector.broadcast %74 : vector<1x32xf32> to vector<160x32xf32>
    %76 = arith.addf %73, %75 : vector<160x32xf32>
    %cst_65 = arith.constant 0.000000e+00 : f32
    %77 = vector.broadcast %cst_65 : f32 to vector<160x32xf32>
    %78 = arith.maximumf %76, %77 : vector<160x32xf32>
    %79 = vector.shape_cast %78 : vector<160x32xf32> to vector<4x40x32xf32>
    %80 = tpu.transpose %79, [0, 2, 1] : vector<4x40x32xf32> -> vector<4x32x40xf32>
    %81 = vector.extract_strided_slice %80 {offsets = [0, 0, 0], sizes = [4, 32, 34], strides = [1, 1, 1]} : vector<4x32x40xf32> to vector<4x32x34xf32>
    %c0_66 = arith.constant 0 : index
    %c0_67 = arith.constant 0 : index
    %c0_68 = arith.constant 0 : index
    %82 = vector.load %arg10[%c0_66, %c0_67, %c0_68] : memref<4x32x34xf32, #tpu.memory_space<vmem>>, vector<4x32x34xf32>
    tpu.vector_store %arg10[%c0_66, %c0_67, %c0_68], %81 {strides = array<i32>} : memref<4x32x34xf32, #tpu.memory_space<vmem>>, vector<4x32x34xf32>,
    return
  }
  func.func @transform_0(%arg0: i32) -> (i32, i32, i32) {
    %c0_i32 = arith.constant 0 : i32
    %c0_i32_0 = arith.constant 0 : i32
    %c0_i32_1 = arith.constant 0 : i32
    return %arg0, %c0_i32, %c0_i32_0 : i32, i32, i32
  }
  func.func @transform_1(%arg0: i32) -> (i32, i32) {
    %c0_i32 = arith.constant 0 : i32
    %c0_i32_0 = arith.constant 0 : i32
    %c0_i32_1 = arith.constant 0 : i32
    return %c0_i32, %c0_i32_0 : i32, i32
  }
  func.func @transform_2(%arg0: i32) -> (i32, i32) {
    %c0_i32 = arith.constant 0 : i32
    %c0_i32_0 = arith.constant 0 : i32
    %c0_i32_1 = arith.constant 0 : i32
    return %c0_i32, %c0_i32_0 : i32, i32
  }
  func.func @transform_3(%arg0: i32) -> (i32, i32) {
    %c0_i32 = arith.constant 0 : i32
    %c0_i32_0 = arith.constant 0 : i32
    %c0_i32_1 = arith.constant 0 : i32
    return %c0_i32, %c0_i32_0 : i32, i32
  }
  func.func @transform_4(%arg0: i32) -> (i32, i32) {
    %c0_i32 = arith.constant 0 : i32
    %c0_i32_0 = arith.constant 0 : i32
    %c0_i32_1 = arith.constant 0 : i32
    return %c0_i32, %c0_i32_0 : i32, i32
  }
  func.func @transform_5(%arg0: i32) -> (i32, i32) {
    %c0_i32 = arith.constant 0 : i32
    %c0_i32_0 = arith.constant 0 : i32
    %c0_i32_1 = arith.constant 0 : i32
    return %c0_i32, %c0_i32_0 : i32, i32
  }
  func.func @transform_6(%arg0: i32) -> (i32, i32) {
    %c0_i32 = arith.constant 0 : i32
    %c0_i32_0 = arith.constant 0 : i32
    %c0_i32_1 = arith.constant 0 : i32
    return %c0_i32, %c0_i32_0 : i32, i32
  }
  func.func @transform_7(%arg0: i32) -> (i32, i32) {
    %c0_i32 = arith.constant 0 : i32
    %c0_i32_0 = arith.constant 0 : i32
    %c0_i32_1 = arith.constant 0 : i32
    return %c0_i32, %c0_i32_0 : i32, i32
  }
  func.func @transform_8(%arg0: i32) -> (i32, i32) {
    %c0_i32 = arith.constant 0 : i32
    %c0_i32_0 = arith.constant 0 : i32
    %c0_i32_1 = arith.constant 0 : i32
    return %c0_i32, %c0_i32_0 : i32, i32
  }
  func.func @transform_9(%arg0: i32) -> (i32, i32, i32) {
    %c0_i32 = arith.constant 0 : i32
    %c0_i32_0 = arith.constant 0 : i32
    %c0_i32_1 = arith.constant 0 : i32
    return %arg0, %c0_i32, %c0_i32_0 : i32, i32, i32
  }
}

</mosaic_0001>

<llo_original>
// kernel: self_info_encoder.1
$region0: #{self_info_encoder.1}
  #allocation0 [shape = 'u32[]', space=smem, size = 0x4, offset = 0x4, fixed_abs, tag = 'smem constant byte address 0x4 - core index']
  #allocation1 [shape = 'u32[72,128]{1,0:T(1,128)}', space=vmem, size = 0x9000, scoped, tag = 'internal scratch']
  #allocation2 [shape = 'f32[4,40,18]{2,1,0:T(8,128)}', space=vmem, size = 0x14000, scoped, tag = 'scratch operand']
  #allocation3 [shape = 'f32[162,18]{1,0:T(8,128)}', space=vmem, size = 0x15000, scoped, tag = 'scratch operand']
  #allocation4 [shape = 'f32[162,64]{1,0:T(8,128)}', space=vmem, size = 0x15000, scoped, tag = 'scratch operand']
  #allocation5 [shape = 'f32[162,64]{1,0:T(8,128)}', space=vmem, size = 0x15000, scoped, tag = 'scratch operand']
  %s0 = inlined_call_operand.vmem [shape: f32[8,34,18], index: 0, kind: input, shape index: {}]
  %s1 = inlined_call_operand.vmem [shape: f32[54,64], index: 1, kind: input, shape index: {}]
  %s2 = inlined_call_operand.vmem [shape: f32[1,64], index: 2, kind: input, shape index: {}]
  %s3 = inlined_call_operand.hbm [shape: f32[192,64], index: 3, kind: input, shape index: {}]
  %s4 = inlined_call_operand.vmem [shape: f32[1,64], index: 4, kind: input, shape index: {}]
  %s5 = inlined_call_operand.vmem [shape: f32[192,64], index: 5, kind: input, shape index: {}]
  %s6 = inlined_call_operand.vmem [shape: f32[1,64], index: 6, kind: input, shape index: {}]
  %s7 = inlined_call_operand.vmem [shape: f32[192,32], index: 7, kind: input, shape index: {}]
  %s8 = inlined_call_operand.vmem [shape: f32[1,32], index: 8, kind: input, shape index: {}]
  %s9 = inlined_call_operand.vmem [shape: f32[8,32,34], index: 9, kind: output, shape index: {}]
  %s10 = sld [smem:[#allocation0]]
  $region73: #{self_info_encoder.1} parent=0
    _
  %s12 = ssub.s32 1, %s10
  %s13 = scalar_select 0, %s12, %s10
  $region1: #{self_info_encoder.1} parent=0
    #allocation6 [shape = 'u8[98304]{0}', space=vmem, size = 0x18000, scoped, tag = 'input window, operand 3, single buffered']
    #allocation7 [shape = 's32[2]{0}', space=sflag, size = 0x8, scoped, tag = 'scoped memory for self_info_encoder.1']
    %14 = vsyncpa [#allocation7], 0
    loop: start=0, step=1, limit=4
    $region2: #{self_info_encoder.1} parent=1 // loop_pre_header
      _
    $region3: #{self_info_encoder.1} parent=1 // loop_header
      %s16 = sphi 0, %s20
      %p17 = scmp.ge.s32.totalorder %s16, 4
      %s26 = sphi 0, %s28
      %s29 = sphi 0, %s26
      %s30 = sphi 0, %s29
      %s46 = sphi 0, %s30
      %s50 = sphi 0, %s50
      %s52 = sphi 0, %s50
      %s53 = sphi 0, %s52
      %s67 = sphi 0, %s53
      %s71 = sphi 0, %s71
      %s73 = sphi 0, %s71
      %s74 = sphi 0, %s73
      %s88 = sphi 0, %s74
      %s92 = sphi 0, %s92
      %s94 = sphi 0, %s92
      %s95 = sphi 0, %s94
      %s109 = sphi 0, %s95
      %s113 = sphi 0, %s113
      %s115 = sphi 0, %s113
      %s116 = sphi 0, %s115
      %s130 = sphi 0, %s116
      %s134 = sphi 0, %s134
      %s136 = sphi 0, %s134
      %s137 = sphi 0, %s136
      %s151 = sphi 0, %s137
      %s155 = sphi 0, %s155
      %s157 = sphi 0, %s155
      %s158 = sphi 0, %s157
      %s172 = sphi 0, %s158
      %s176 = sphi 0, %s176
      %s178 = sphi 0, %s176
      %s179 = sphi 0, %s178
      %s193 = sphi 0, %s179
      %s197 = sphi 0, %s197
      %s199 = sphi 0, %s197
      %s200 = sphi 0, %s199
      %s214 = sphi 0, %s200
      %s220 = sphi 0, %s222
      %s223 = sphi 0, %s220
      %s224 = sphi 0, %s223
      %s240 = sphi 0, %s224
    $region4: #{self_info_encoder.1} parent=1 // loop_header_branch
      %19 = sbr.rel (%p17) target = $region8
    $region5: #{self_info_encoder.1} parent=1 // loop_body
      %s21 = ssub.s32 %s16, 1
      %s22 = ssub.s32 %s16, 2
      %s23 = sadd.s32 %s16, 1
      %s24 = ssub.s32 %s16, %s23
      %p25 = scmp.eq.s32.totalorder %s24, 0
      %s27 = sadd.s32 %s26, 1
      %s28 = scalar_select %p25, %s26, %s27
      %p31 = pneg %p25
      %p32 = scmp.eq.s32.totalorder %s16, 1
      %p33 = por %p31, %p32
      %p34 = scmp.ne.s32.totalorder %s26, %s29
      %p35 = scmp.eq.s32.totalorder %s16, 0
      %p36 = por %p34, %p35
      %p37 = scmp.ne.s32.totalorder %s26, %s29
      %p38 = scmp.eq.s32.totalorder %s21, 1
      %p39 = por %p37, %p38
      %p40 = scmp.ne.s32.totalorder %s29, %s30
      %p41 = scmp.eq.s32.totalorder %s21, 0
      %p42 = por %p40, %p41
      %p43 = scmp.ne.s32.totalorder %s29, %s30
      %p44 = scmp.eq.s32.totalorder %s22, 1
      %p45 = por %p43, %p44
      %p47 = scmp.ne.s32.totalorder %s30, %s46
      %p48 = scmp.eq.s32.totalorder %s22, 0
      %p49 = por %p47, %p48
      %s51 = sadd.s32 %s50, 1
      %p54 = scmp.eq.s32.totalorder %s16, 1
      %p55 = scmp.ne.s32.totalorder %s50, %s52
      %p56 = scmp.eq.s32.totalorder %s16, 0
      %p57 = por %p55, %p56
      %p58 = scmp.ne.s32.totalorder %s50, %s52
      %p59 = scmp.eq.s32.totalorder %s21, 1
      %p60 = por %p58, %p59
      %p61 = scmp.ne.s32.totalorder %s52, %s53
      %p62 = scmp.eq.s32.totalorder %s21, 0
      %p63 = por %p61, %p62
      %p64 = scmp.ne.s32.totalorder %s52, %s53
      %p65 = scmp.eq.s32.totalorder %s22, 1
      %p66 = por %p64, %p65
      %p68 = scmp.ne.s32.totalorder %s53, %s67
      %p69 = scmp.eq.s32.totalorder %s22, 0
      %p70 = por %p68, %p69
      %s72 = sadd.s32 %s71, 1
      %p75 = scmp.eq.s32.totalorder %s16, 1
      %p76 = scmp.ne.s32.totalorder %s71, %s73
      %p77 = scmp.eq.s32.totalorder %s16, 0
      %p78 = por %p76, %p77
      %p79 = scmp.ne.s32.totalorder %s71, %s73
      %p80 = scmp.eq.s32.totalorder %s21, 1
      %p81 = por %p79, %p80
      %p82 = scmp.ne.s32.totalorder %s73, %s74
      %p83 = scmp.eq.s32.totalorder %s21, 0
      %p84 = por %p82, %p83
      %p85 = scmp.ne.s32.totalorder %s73, %s74
      %p86 = scmp.eq.s32.totalorder %s22, 1
      %p87 = por %p85, %p86
      %p89 = scmp.ne.s32.totalorder %s74, %s88
      %p90 = scmp.eq.s32.totalorder %s22, 0
      %p91 = por %p89, %p90
      %s93 = sadd.s32 %s92, 1
      %p96 = scmp.eq.s32.totalorder %s16, 1
      %p97 = scmp.ne.s32.totalorder %s92, %s94
      %p98 = scmp.eq.s32.totalorder %s16, 0
      %p99 = por %p97, %p98
      %p100 = scmp.ne.s32.totalorder %s92, %s94
      %p101 = scmp.eq.s32.totalorder %s21, 1
      %p102 = por %p100, %p101
      %p103 = scmp.ne.s32.totalorder %s94, %s95
      %p104 = scmp.eq.s32.totalorder %s21, 0
      %p105 = por %p103, %p104
      %p106 = scmp.ne.s32.totalorder %s94, %s95
      %p107 = scmp.eq.s32.totalorder %s22, 1
      %p108 = por %p106, %p107
      %p110 = scmp.ne.s32.totalorder %s95, %s109
      %p111 = scmp.eq.s32.totalorder %s22, 0
      %p112 = por %p110, %p111
      %s114 = sadd.s32 %s113, 1
      %p117 = scmp.eq.s32.totalorder %s16, 1
      %p118 = scmp.ne.s32.totalorder %s113, %s115
      %p119 = scmp.eq.s32.totalorder %s16, 0
      %p120 = por %p118, %p119
      %p121 = scmp.ne.s32.totalorder %s113, %s115
      %p122 = scmp.eq.s32.totalorder %s21, 1
      %p123 = por %p121, %p122
      %p124 = scmp.ne.s32.totalorder %s115, %s116
      %p125 = scmp.eq.s32.totalorder %s21, 0
      %p126 = por %p124, %p125
      %p127 = scmp.ne.s32.totalorder %s115, %s116
      %p128 = scmp.eq.s32.totalorder %s22, 1
      %p129 = por %p127, %p128
      %p131 = scmp.ne.s32.totalorder %s116, %s130
      %p132 = scmp.eq.s32.totalorder %s22, 0
      %p133 = por %p131, %p132
      %s135 = sadd.s32 %s134, 1
      %p138 = scmp.eq.s32.totalorder %s16, 1
      %p139 = scmp.ne.s32.totalorder %s134, %s136
      %p140 = scmp.eq.s32.totalorder %s16, 0
      %p141 = por %p139, %p140
      %p142 = scmp.ne.s32.totalorder %s134, %s136
      %p143 = scmp.eq.s32.totalorder %s21, 1
      %p144 = por %p142, %p143
      %p145 = scmp.ne.s32.totalorder %s136, %s137
      %p146 = scmp.eq.s32.totalorder %s21, 0
      %p147 = por %p145, %p146
      %p148 = scmp.ne.s32.totalorder %s136, %s137
      %p149 = scmp.eq.s32.totalorder %s22, 1
      %p150 = por %p148, %p149
      %p152 = scmp.ne.s32.totalorder %s137, %s151
      %p153 = scmp.eq.s32.totalorder %s22, 0
      %p154 = por %p152, %p153
      %s156 = sadd.s32 %s155, 1
      %p159 = scmp.eq.s32.totalorder %s16, 1
      %p160 = scmp.ne.s32.totalorder %s155, %s157
      %p161 = scmp.eq.s32.totalorder %s16, 0
      %p162 = por %p160, %p161
      %p163 = scmp.ne.s32.totalorder %s155, %s157
      %p164 = scmp.eq.s32.totalorder %s21, 1
      %p165 = por %p163, %p164
      %p166 = scmp.ne.s32.totalorder %s157, %s158
      %p167 = scmp.eq.s32.totalorder %s21, 0
      %p168 = por %p166, %p167
      %p169 = scmp.ne.s32.totalorder %s157, %s158
      %p170 = scmp.eq.s32.totalorder %s22, 1
      %p171 = por %p169, %p170
      %p173 = scmp.ne.s32.totalorder %s158, %s172
      %p174 = scmp.eq.s32.totalorder %s22, 0
      %p175 = por %p173, %p174
      %s177 = sadd.s32 %s176, 1
      %p180 = scmp.eq.s32.totalorder %s16, 1
      %p181 = scmp.ne.s32.totalorder %s176, %s178
      %p182 = scmp.eq.s32.totalorder %s16, 0
      %p183 = por %p181, %p182
      %p184 = scmp.ne.s32.totalorder %s176, %s178
      %p185 = scmp.eq.s32.totalorder %s21, 1
      %p186 = por %p184, %p185
      %p187 = scmp.ne.s32.totalorder %s178, %s179
      %p188 = scmp.eq.s32.totalorder %s21, 0
      %p189 = por %p187, %p188
      %p190 = scmp.ne.s32.totalorder %s178, %s179
      %p191 = scmp.eq.s32.totalorder %s22, 1
      %p192 = por %p190, %p191
      %p194 = scmp.ne.s32.totalorder %s179, %s193
      %p195 = scmp.eq.s32.totalorder %s22, 0
      %p196 = por %p194, %p195
      %s198 = sadd.s32 %s197, 1
      %p201 = scmp.eq.s32.totalorder %s16, 1
      %p202 = scmp.ne.s32.totalorder %s197, %s199
      %p203 = scmp.eq.s32.totalorder %s16, 0
      %p204 = por %p202, %p203
      %p205 = scmp.ne.s32.totalorder %s197, %s199
      %p206 = scmp.eq.s32.totalorder %s21, 1
      %p207 = por %p205, %p206
      %p208 = scmp.ne.s32.totalorder %s199, %s200
      %p209 = scmp.eq.s32.totalorder %s21, 0
      %p210 = por %p208, %p209
      %p211 = scmp.ne.s32.totalorder %s199, %s200
      %p212 = scmp.eq.s32.totalorder %s22, 1
      %p213 = por %p211, %p212
      %p215 = scmp.ne.s32.totalorder %s200, %s214
      %p216 = scmp.eq.s32.totalorder %s22, 0
      %p217 = por %p215, %p216
      %s218 = ssub.s32 %s16, %s23
      %p219 = scmp.eq.s32.totalorder %s218, 0
      %s221 = sadd.s32 %s220, 1
      %s222 = scalar_select %p219, %s220, %s221
      %p225 = pneg %p219
      %p226 = scmp.eq.s32.totalorder %s16, 1
      %p227 = por %p225, %p226
      %p228 = scmp.ne.s32.totalorder %s220, %s223
      %p229 = scmp.eq.s32.totalorder %s16, 0
      %p230 = por %p228, %p229
      %p231 = scmp.ne.s32.totalorder %s220, %s223
      %p232 = scmp.eq.s32.totalorder %s21, 1
      %p233 = por %p231, %p232
      %p234 = scmp.ne.s32.totalorder %s223, %s224
      %p235 = scmp.eq.s32.totalorder %s21, 0
      %p236 = por %p234, %p235
      %p237 = scmp.ne.s32.totalorder %s223, %s224
      %p238 = scmp.eq.s32.totalorder %s22, 1
      %p239 = por %p237, %p238
      %p241 = scmp.ne.s32.totalorder %s224, %s240
      %p242 = scmp.eq.s32.totalorder %s22, 0
      %p243 = por %p241, %p242
      %p244 = scmp.le.s32.totalorder 1, %s16
      %p245 = scmp.lt.s32.totalorder %s16, 3
      %p246 = pnand %p244, %p245
      %p247 = pneg %p246
      // Predicated region
      $region9: #{self_info_encoder.1} parent=5 // pred_check
        _
      $region10: #{self_info_encoder.1} parent=5 // pred_check_branch
        %249 = sbr.rel (%p246) target = $region12
      $region11: #{self_info_encoder.1} parent=5 // pred_region
        %s250 = ssub.s32 %s16, 1
        // Predicated region
        $region13: #{self_info_encoder.1} parent=11 // pred_check
          %p251 = pneg %p63
        $region14: #{self_info_encoder.1} parent=11 // pred_check_branch
          %253 = sbr.rel (%p251) target = $region16
        $region15: #{self_info_encoder.1} parent=11 // pred_region
          _
        $region16: #{self_info_encoder.1} parent=11 // pred_fallthru
          _
        // Predicated region
        $region17: #{self_info_encoder.1} parent=11 // pred_check
          %p254 = pneg %p84
        $region18: #{self_info_encoder.1} parent=11 // pred_check_branch
          %256 = sbr.rel (%p254) target = $region20
        $region19: #{self_info_encoder.1} parent=11 // pred_region
          _
        $region20: #{self_info_encoder.1} parent=11 // pred_fallthru
          _
        // Predicated region
        $region21: #{self_info_encoder.1} parent=11 // pred_check
          %p257 = pneg %p105
        $region22: #{self_info_encoder.1} parent=11 // pred_check_branch
          %259 = sbr.rel (%p257) target = $region24
        $region23: #{self_info_encoder.1} parent=11 // pred_region
          %261 = vsyncadd [#allocation7], 0
          %s262 = sshll.u32 %s3, 4
          %s263 = int_to_ptr.hbm [resolvable:$true] %s262
          %s264 = sshll.u32 [#allocation6], 4
          %s265 = int_to_ptr.vmem [resolvable:$true] %s264
          %270 = dma.hbm_to_vmem [thread:$0]  %s263, 3072, %s265, [#allocation7], 128, 128, 8
        $region24: #{self_info_encoder.1} parent=11 // pred_fallthru
          _
        // Predicated region
        $region25: #{self_info_encoder.1} parent=11 // pred_check
          %p271 = pneg %p126
        $region26: #{self_info_encoder.1} parent=11 // pred_check_branch
          %273 = sbr.rel (%p271) target = $region28
        $region27: #{self_info_encoder.1} parent=11 // pred_region
          _
        $region28: #{self_info_encoder.1} parent=11 // pred_fallthru
          _
        // Predicated region
        $region29: #{self_info_encoder.1} parent=11 // pred_check
          %p274 = pneg %p147
        $region30: #{self_info_encoder.1} parent=11 // pred_check_branch
          %276 = sbr.rel (%p274) target = $region32
        $region31: #{self_info_encoder.1} parent=11 // pred_region
          _
        $region32: #{self_info_encoder.1} parent=11 // pred_fallthru
          _
        // Predicated region
        $region33: #{self_info_encoder.1} parent=11 // pred_check
          %p277 = pneg %p168
        $region34: #{self_info_encoder.1} parent=11 // pred_check_branch
          %279 = sbr.rel (%p277) target = $region36
        $region35: #{self_info_encoder.1} parent=11 // pred_region
          _
        $region36: #{self_info_encoder.1} parent=11 // pred_fallthru
          _
        // Predicated region
        $region37: #{self_info_encoder.1} parent=11 // pred_check
          %p280 = pneg %p189
        $region38: #{self_info_encoder.1} parent=11 // pred_check_branch
          %282 = sbr.rel (%p280) target = $region40
        $region39: #{self_info_encoder.1} parent=11 // pred_region
          _
        $region40: #{self_info_encoder.1} parent=11 // pred_fallthru
          _
        // Predicated region
        $region41: #{self_info_encoder.1} parent=11 // pred_check
          %p283 = pneg %p210
        $region42: #{self_info_encoder.1} parent=11 // pred_check_branch
          %285 = sbr.rel (%p283) target = $region44
        $region43: #{self_info_encoder.1} parent=11 // pred_region
          _
        $region44: #{self_info_encoder.1} parent=11 // pred_fallthru
          _
      $region12: #{self_info_encoder.1} parent=5 // pred_fallthru
        _
      %p286 = scmp.lt.s32.totalorder %s16, 2
      // Predicated region
      $region45: #{self_info_encoder.1} parent=5 // pred_check
        %p287 = pneg %p286
      $region46: #{self_info_encoder.1} parent=5 // pred_check_branch
        %289 = sbr.rel (%p287) target = $region48
      $region47: #{self_info_encoder.1} parent=5 // pred_region
        // Predicated region
        $region49: #{self_info_encoder.1} parent=47 // pred_check
          %p290 = pneg %p36
        $region50: #{self_info_encoder.1} parent=47 // pred_check_branch
          %292 = sbr.rel (%p290) target = $region52
        $region51: #{self_info_encoder.1} parent=47 // pred_region
          %s293 = smul.u32 4, %s16
          %p294 = scmp.lt.s32.totalorder %s293, 7
          %s295 = scalar_select %p294, %s293, 7
          %s296 = smul.addr %s295, 5
          %s297 = smul.addr %s296, 8
          %s298 = scalar_lea.vmem %s0, %s297
          %s299 = smul.u32 4, %s16
        $region52: #{self_info_encoder.1} parent=47 // pred_fallthru
          _
      $region48: #{self_info_encoder.1} parent=5 // pred_fallthru
        _
      %p300 = scmp.le.s32.totalorder 1, %s16
      %p301 = scmp.lt.s32.totalorder %s16, 3
      %p302 = pnand %p300, %p301
      %p303 = pneg %p302
      // Predicated region
      $region53: #{self_info_encoder.1} parent=5 // pred_check
        _
      $region54: #{self_info_encoder.1} parent=5 // pred_check_branch
        %305 = sbr.rel (%p302) target = $region56
      $region55: #{self_info_encoder.1} parent=5 // pred_region
        %s306 = ssub.s32 %s16, 1
        // Predicated region
        $region57: #{self_info_encoder.1} parent=55 // pred_check
          %p307 = pneg %p105
        $region58: #{self_info_encoder.1} parent=55 // pred_check_branch
          %309 = sbr.rel (%p307) target = $region60
        $region59: #{self_info_encoder.1} parent=55 // pred_region
          %311 = dma.done [#allocation7], 3072
        $region60: #{self_info_encoder.1} parent=55 // pred_fallthru
          _
        %s312 = smul.u32 4, %s21
        %p313 = scmp.lt.s32.totalorder %s312, 7
        %s314 = scalar_select %p313, %s312, 7
        %s315 = smul.addr %s314, 5
        %s316 = smul.addr %s315, 8
        %s317 = scalar_lea.vmem %s0, %s316
        %p318 = pneg %p42
        %p319 = pneg %p39
        %p320 = pneg %p63
        %p321 = pneg %p60
        %p322 = pneg %p84
        %p323 = pneg %p81
        %p324 = pneg %p105
        %p325 = pneg %p102
        %p326 = pneg %p126
        %p327 = pneg %p123
        %p328 = pneg %p147
        %p329 = pneg %p144
        %p330 = pneg %p168
        %p331 = pneg %p165
        %p332 = pneg %p189
        %p333 = pneg %p186
        %p334 = pneg %p210
        %p335 = pneg %p207
        %p336 = pneg %p236
        %p337 = pneg %p233
        %s338 = smul.u32 4, %s21
        %p339 = scmp.lt.s32.totalorder %s338, 7
        %s340 = scalar_select %p339, %s338, 7
        %s341 = smul.addr %s340, 4
        %s342 = smul.addr %s341, 8
        %s343 = scalar_lea.vmem %s9, %s342
        %s344 = smul.u32 4, %s21
        %p345 = scmp.lt.s32.totalorder %s344, 7
        %s346 = scalar_select %p345, %s344, 7
        %s347 = smul.addr %s346, 5
        %s348 = smul.addr %s347, 8
        %s349 = scalar_lea.vmem %s0, %s348
        %s350 = smul.u32 4, %s21
        %s351 = smul.u32 4, %s21
        %p352 = scmp.lt.s32.totalorder %s351, 7
        %s353 = scalar_select %p352, %s351, 7
        %s354 = smul.addr %s353, 4
        %s355 = smul.addr %s354, 8
        %s356 = scalar_lea.vmem %s9, %s355
        %s357 = smul.u32 4, %s21
        %vm358 = vcmask 144384
        %359 = vst.msk [vmem:[#allocation2 + $0x22] sm:$0x3f] %vm358, 0.0
        %360 = vst.msk [vmem:[#allocation2 + $0x4a] sm:$0x3f] %vm358, 0.0
        %361 = vst.msk [vmem:[#allocation2 + $0x72] sm:$0x3f] %vm358, 0.0
        %362 = vst.msk [vmem:[#allocation2 + $0x9a] sm:$0x3f] %vm358, 0.0
        %vm363 = vcmask 139264
        %364 = vst.msk [vmem:[#allocation3] sm:$0x1] %vm363, 0.0
        %365 = vst.msk [vmem:[#allocation3 + $0xa1] sm:$0x1] %vm363, 0.0
        %vm366 = vcmask 516096
        %367 = vst.msk [vmem:[#allocation4] sm:$0x1] %vm366, 0.0
        %368 = vst.msk [vmem:[#allocation4 + $0xa1] sm:$0x1] %vm366, 0.0
        %369 = vst.msk [vmem:[#allocation5] sm:$0x1] %vm366, 0.0
        %370 = vst.msk [vmem:[#allocation5 + $0xa1] sm:$0x1] %vm366, 0.0
        %v371 = vld [vmem:[%s349] sm:$0xff]
        %v372 = vld [vmem:[%s349 + $0x8] sm:$0xff]
        %v373 = vld [vmem:[%s349 + $0x10] sm:$0xff]
        %v374 = vld [vmem:[%s349 + $0x18] sm:$0xff]
        %v375 = vld [vmem:[%s349 + $0x20] sm:$0x3]
        %v376 = vld [vmem:[%s349 + $0x28] sm:$0xff]
        %v377 = vld [vmem:[%s349 + $0x30] sm:$0xff]
        %v378 = vld [vmem:[%s349 + $0x38] sm:$0xff]
        %v379 = vld [vmem:[%s349 + $0x40] sm:$0xff]
        %v380 = vld [vmem:[%s349 + $0x48] sm:$0x3]
        %v381 = vld [vmem:[%s349 + $0x50] sm:$0xff]
        %v382 = vld [vmem:[%s349 + $0x58] sm:$0xff]
        %v383 = vld [vmem:[%s349 + $0x60] sm:$0xff]
        %v384 = vld [vmem:[%s349 + $0x68] sm:$0xff]
        %v385 = vld [vmem:[%s349 + $0x70] sm:$0x3]
        %v386 = vld [vmem:[%s349 + $0x78] sm:$0xff]
        %v387 = vld [vmem:[%s349 + $0x80] sm:$0xff]
        %v388 = vld [vmem:[%s349 + $0x88] sm:$0xff]
        %v389 = vld [vmem:[%s349 + $0x90] sm:$0xff]
        %v390 = vld [vmem:[%s349 + $0x98] sm:$0x3]
        %vm391 = vcmask 146432
        %392 = vst.msk [vmem:[#allocation2] sm:$0xff] %vm391, %v371
        %393 = vst.msk [vmem:[#allocation2 + $0x8] sm:$0xff] %vm391, %v372
        %394 = vst.msk [vmem:[#allocation2 + $0x10] sm:$0xff] %vm391, %v373
        %395 = vst.msk [vmem:[#allocation2 + $0x18] sm:$0xff] %vm391, %v374
        %vm396 = vcmask 140288
        %397 = vst.msk [vmem:[#allocation2 + $0x20] sm:$0x3] %vm396, %v375
        %398 = vst.msk [vmem:[#allocation2 + $0x28] sm:$0xff] %vm391, %v376
        %399 = vst.msk [vmem:[#allocation2 + $0x30] sm:$0xff] %vm391, %v377
        %400 = vst.msk [vmem:[#allocation2 + $0x38] sm:$0xff] %vm391, %v378
        %401 = vst.msk [vmem:[#allocation2 + $0x40] sm:$0xff] %vm391, %v379
        %402 = vst.msk [vmem:[#allocation2 + $0x48] sm:$0x3] %vm396, %v380
        %403 = vst.msk [vmem:[#allocation2 + $0x50] sm:$0xff] %vm391, %v381
        %404 = vst.msk [vmem:[#allocation2 + $0x58] sm:$0xff] %vm391, %v382
        %405 = vst.msk [vmem:[#allocation2 + $0x60] sm:$0xff] %vm391, %v383
        %406 = vst.msk [vmem:[#allocation2 + $0x68] sm:$0xff] %vm391, %v384
        %407 = vst.msk [vmem:[#allocation2 + $0x70] sm:$0x3] %vm396, %v385
        %408 = vst.msk [vmem:[#allocation2 + $0x78] sm:$0xff] %vm391, %v386
        %409 = vst.msk [vmem:[#allocation2 + $0x80] sm:$0xff] %vm391, %v387
        %410 = vst.msk [vmem:[#allocation2 + $0x88] sm:$0xff] %vm391, %v388
        %411 = vst.msk [vmem:[#allocation2 + $0x90] sm:$0xff] %vm391, %v389
        %412 = vst.msk [vmem:[#allocation2 + $0x98] sm:$0x3] %vm396, %v390
        %v413 = vld [vmem:[#allocation2] sm:$0xff]
        %v414 = vld [vmem:[#allocation2 + $0x8] sm:$0xff]
        %v415 = vld [vmem:[#allocation2 + $0x10] sm:$0xff]
        %v416 = vld [vmem:[#allocation2 + $0x18] sm:$0xff]
        %v417 = vld [vmem:[#allocation2 + $0x20] sm:$0xff]
        %v418 = vld [vmem:[#allocation2 + $0x28] sm:$0xff]
        %v419 = vld [vmem:[#allocation2 + $0x30] sm:$0xff]
        %v420 = vld [vmem:[#allocation2 + $0x38] sm:$0xff]
        %v421 = vld [vmem:[#allocation2 + $0x40] sm:$0xff]
        %v422 = vld [vmem:[#allocation2 + $0x48] sm:$0xff]
        %v423 = vld [vmem:[#allocation2 + $0x50] sm:$0xff]
        %v424 = vld [vmem:[#allocation2 + $0x58] sm:$0xff]
        %v425 = vld [vmem:[#allocation2 + $0x60] sm:$0xff]
        %v426 = vld [vmem:[#allocation2 + $0x68] sm:$0xff]
        %v427 = vld [vmem:[#allocation2 + $0x70] sm:$0xff]
        %v428 = vld [vmem:[#allocation2 + $0x78] sm:$0xff]
        %v429 = vld [vmem:[#allocation2 + $0x80] sm:$0xff]
        %v430 = vld [vmem:[#allocation2 + $0x88] sm:$0xff]
        %v431 = vld [vmem:[#allocation2 + $0x90] sm:$0xff]
        %v432 = vld [vmem:[#allocation2 + $0x98] sm:$0xff]
        %433 = vst.msk [vmem:[#allocation3 + $0x1] sm:$0xff] %vm391, %v413
        %434 = vst.msk [vmem:[#allocation3 + $0x9] sm:$0xff] %vm391, %v414
        %435 = vst.msk [vmem:[#allocation3 + $0x11] sm:$0xff] %vm391, %v415
        %436 = vst.msk [vmem:[#allocation3 + $0x19] sm:$0xff] %vm391, %v416
        %437 = vst.msk [vmem:[#allocation3 + $0x21] sm:$0xff] %vm391, %v417
        %438 = vst.msk [vmem:[#allocation3 + $0x29] sm:$0xff] %vm391, %v418
        %439 = vst.msk [vmem:[#allocation3 + $0x31] sm:$0xff] %vm391, %v419
        %440 = vst.msk [vmem:[#allocation3 + $0x39] sm:$0xff] %vm391, %v420
        %441 = vst.msk [vmem:[#allocation3 + $0x41] sm:$0xff] %vm391, %v421
        %442 = vst.msk [vmem:[#allocation3 + $0x49] sm:$0xff] %vm391, %v422
        %443 = vst.msk [vmem:[#allocation3 + $0x51] sm:$0xff] %vm391, %v423
        %444 = vst.msk [vmem:[#allocation3 + $0x59] sm:$0xff] %vm391, %v424
        %445 = vst.msk [vmem:[#allocation3 + $0x61] sm:$0xff] %vm391, %v425
        %446 = vst.msk [vmem:[#allocation3 + $0x69] sm:$0xff] %vm391, %v426
        %447 = vst.msk [vmem:[#allocation3 + $0x71] sm:$0xff] %vm391, %v427
        %448 = vst.msk [vmem:[#allocation3 + $0x79] sm:$0xff] %vm391, %v428
        %449 = vst.msk [vmem:[#allocation3 + $0x81] sm:$0xff] %vm391, %v429
        %450 = vst.msk [vmem:[#allocation3 + $0x89] sm:$0xff] %vm391, %v430
        %451 = vst.msk [vmem:[#allocation3 + $0x91] sm:$0xff] %vm391, %v431
        %452 = vst.msk [vmem:[#allocation3 + $0x99] sm:$0xff] %vm391, %v432
        %v453 = vlaneseq
        %v454 = vshrl.u32 %v453, 7
        %v455 = vadd.s32 %v454, 8
        %v456 = vadd.s32 %v454, 16
        %v457 = vadd.s32 %v454, 24
        %v458 = vadd.s32 %v454, 32
        %vm459 = vcmp.lt.s32.totalorder %v454, 34
        %vm460 = vcmp.lt.s32.totalorder %v455, 34
        %vm461 = vcmp.lt.s32.totalorder %v456, 34
        %vm462 = vcmp.lt.s32.totalorder %v457, 34
        %vm463 = vcmp.lt.s32.totalorder %v458, 34
        %v464 = vsel %vm459, 1, 0
        %v465 = vsel %vm460, 1, 0
        %v466 = vsel %vm461, 1, 0
        %v467 = vsel %vm462, 1, 0
        %v468 = vsel %vm463, 1, 0
        %v469 = vcvt.s32.f32 %v464
        %v470 = vcvt.s32.f32 %v465
        %v471 = vcvt.s32.f32 %v466
        %v472 = vcvt.s32.f32 %v467
        %v473 = vcvt.s32.f32 %v468
        %v474 = vld [vmem:[#allocation3] sm:$0xff]
        %v475 = vld [vmem:[#allocation3 + $0x8] sm:$0xff]
        %v476 = vld [vmem:[#allocation3 + $0x10] sm:$0xff]
        %v477 = vld [vmem:[#allocation3 + $0x18] sm:$0xff]
        %v478 = vld [vmem:[#allocation3 + $0x20] sm:$0xff]
        %v479 = vld [vmem:[#allocation3 + $0x28] sm:$0xff]
        %v480 = vld [vmem:[#allocation3 + $0x30] sm:$0xff]
        %v481 = vld [vmem:[#allocation3 + $0x38] sm:$0xff]
        %v482 = vld [vmem:[#allocation3 + $0x40] sm:$0xff]
        %v483 = vld [vmem:[#allocation3 + $0x48] sm:$0xff]
        %v484 = vld [vmem:[#allocation3 + $0x50] sm:$0xff]
        %v485 = vld [vmem:[#allocation3 + $0x58] sm:$0xff]
        %v486 = vld [vmem:[#allocation3 + $0x60] sm:$0xff]
        %v487 = vld [vmem:[#allocation3 + $0x68] sm:$0xff]
        %v488 = vld [vmem:[#allocation3 + $0x70] sm:$0xff]
        %v489 = vld [vmem:[#allocation3 + $0x78] sm:$0xff]
        %v490 = vld [vmem:[#allocation3 + $0x80] sm:$0xff]
        %v491 = vld [vmem:[#allocation3 + $0x88] sm:$0xff]
        %v492 = vld [vmem:[#allocation3 + $0x90] sm:$0xff]
        %v493 = vld [vmem:[#allocation3 + $0x98] sm:$0xff]
        %v494 = vld [vmem:[#allocation3 + $0xa0] sm:$0x3]
        %vm516 = vcmask 1046528
        %v517 = vrot.slane %v474, 1
        %v518 = vrot.slane %v475, 1
        %v519 = vsel %vm516, %v517, %v518
        %v520 = vrot.slane %v476, 1
        %v521 = vsel %vm516, %v518, %v520
        %v522 = vrot.slane %v477, 1
        %v523 = vsel %vm516, %v520, %v522
        %v524 = vrot.slane %v478, 1
        %v525 = vsel %vm516, %v522, %v524
        %v526 = vrot.slane %v479, 1
        %v527 = vsel %vm516, %v524, %v526
        %v528 = vrot.slane %v480, 1
        %v529 = vsel %vm516, %v526, %v528
        %v530 = vrot.slane %v481, 1
        %v531 = vsel %vm516, %v528, %v530
        %v532 = vrot.slane %v482, 1
        %v533 = vsel %vm516, %v530, %v532
        %v534 = vrot.slane %v483, 1
        %v535 = vsel %vm516, %v532, %v534
        %v536 = vrot.slane %v484, 1
        %v537 = vsel %vm516, %v534, %v536
        %v538 = vrot.slane %v485, 1
        %v539 = vsel %vm516, %v536, %v538
        %v540 = vrot.slane %v486, 1
        %v541 = vsel %vm516, %v538, %v540
        %v542 = vrot.slane %v487, 1
        %v543 = vsel %vm516, %v540, %v542
        %v544 = vrot.slane %v488, 1
        %v545 = vsel %vm516, %v542, %v544
        %v546 = vrot.slane %v489, 1
        %v547 = vsel %vm516, %v544, %v546
        %v548 = vrot.slane %v490, 1
        %v549 = vsel %vm516, %v546, %v548
        %v550 = vrot.slane %v491, 1
        %v551 = vsel %vm516, %v548, %v550
        %v552 = vrot.slane %v492, 1
        %v553 = vsel %vm516, %v550, %v552
        %v554 = vrot.slane %v493, 1
        %v555 = vsel %vm516, %v552, %v554
        %v556 = vrot.slane %v494, 1
        %v557 = vsel %vm516, %v554, %v556
        %558 = vrot.lane.b32.xlu0 %v519, 18
        %v559 = vpop.permute.xlu0 %558
        %560 = vrot.lane.b32.xlu0 %v521, 18
        %v561 = vpop.permute.xlu0 %560
        %562 = vrot.lane.b32.xlu0 %v523, 18
        %v563 = vpop.permute.xlu0 %562
        %564 = vrot.lane.b32.xlu0 %v525, 18
        %v565 = vpop.permute.xlu0 %564
        %566 = vrot.lane.b32.xlu0 %v527, 18
        %v567 = vpop.permute.xlu0 %566
        %568 = vrot.lane.b32.xlu0 %v529, 18
        %v569 = vpop.permute.xlu0 %568
        %570 = vrot.lane.b32.xlu0 %v531, 18
        %v571 = vpop.permute.xlu0 %570
        %572 = vrot.lane.b32.xlu0 %v533, 18
        %v573 = vpop.permute.xlu0 %572
        %574 = vrot.lane.b32.xlu0 %v535, 18
        %v575 = vpop.permute.xlu0 %574
        %576 = vrot.lane.b32.xlu0 %v537, 18
        %v577 = vpop.permute.xlu0 %576
        %578 = vrot.lane.b32.xlu0 %v539, 18
        %v579 = vpop.permute.xlu0 %578
        %580 = vrot.lane.b32.xlu0 %v541, 18
        %v581 = vpop.permute.xlu0 %580
        %582 = vrot.lane.b32.xlu0 %v543, 18
        %v583 = vpop.permute.xlu0 %582
        %584 = vrot.lane.b32.xlu0 %v545, 18
        %v585 = vpop.permute.xlu0 %584
        %586 = vrot.lane.b32.xlu0 %v547, 18
        %v587 = vpop.permute.xlu0 %586
        %588 = vrot.lane.b32.xlu0 %v549, 18
        %v589 = vpop.permute.xlu0 %588
        %590 = vrot.lane.b32.xlu0 %v551, 18
        %v591 = vpop.permute.xlu0 %590
        %592 = vrot.lane.b32.xlu0 %v553, 18
        %v593 = vpop.permute.xlu0 %592
        %594 = vrot.lane.b32.xlu0 %v555, 18
        %v595 = vpop.permute.xlu0 %594
        %596 = vrot.lane.b32.xlu0 %v557, 18
        %v597 = vpop.permute.xlu0 %596
        %vm618 = vcmask 1045504
        %v619 = vrot.slane %v474, 2
        %v620 = vrot.slane %v475, 2
        %v621 = vsel %vm618, %v619, %v620
        %v622 = vrot.slane %v476, 2
        %v623 = vsel %vm618, %v620, %v622
        %v624 = vrot.slane %v477, 2
        %v625 = vsel %vm618, %v622, %v624
        %v626 = vrot.slane %v478, 2
        %v627 = vsel %vm618, %v624, %v626
        %v628 = vrot.slane %v479, 2
        %v629 = vsel %vm618, %v626, %v628
        %v630 = vrot.slane %v480, 2
        %v631 = vsel %vm618, %v628, %v630
        %v632 = vrot.slane %v481, 2
        %v633 = vsel %vm618, %v630, %v632
        %v634 = vrot.slane %v482, 2
        %v635 = vsel %vm618, %v632, %v634
        %v636 = vrot.slane %v483, 2
        %v637 = vsel %vm618, %v634, %v636
        %v638 = vrot.slane %v484, 2
        %v639 = vsel %vm618, %v636, %v638
        %v640 = vrot.slane %v485, 2
        %v641 = vsel %vm618, %v638, %v640
        %v642 = vrot.slane %v486, 2
        %v643 = vsel %vm618, %v640, %v642
        %v644 = vrot.slane %v487, 2
        %v645 = vsel %vm618, %v642, %v644
        %v646 = vrot.slane %v488, 2
        %v647 = vsel %vm618, %v644, %v646
        %v648 = vrot.slane %v489, 2
        %v649 = vsel %vm618, %v646, %v648
        %v650 = vrot.slane %v490, 2
        %v651 = vsel %vm618, %v648, %v650
        %v652 = vrot.slane %v491, 2
        %v653 = vsel %vm618, %v650, %v652
        %v654 = vrot.slane %v492, 2
        %v655 = vsel %vm618, %v652, %v654
        %v656 = vrot.slane %v493, 2
        %v657 = vsel %vm618, %v654, %v656
        %v658 = vrot.slane %v494, 2
        %v659 = vsel %vm618, %v656, %v658
        %660 = vrot.lane.b32.xlu0 %v621, 36
        %v661 = vpop.permute.xlu0 %660
        %662 = vrot.lane.b32.xlu0 %v623, 36
        %v663 = vpop.permute.xlu0 %662
        %664 = vrot.lane.b32.xlu0 %v625, 36
        %v665 = vpop.permute.xlu0 %664
        %666 = vrot.lane.b32.xlu0 %v627, 36
        %v667 = vpop.permute.xlu0 %666
        %668 = vrot.lane.b32.xlu0 %v629, 36
        %v669 = vpop.permute.xlu0 %668
        %670 = vrot.lane.b32.xlu0 %v631, 36
        %v671 = vpop.permute.xlu0 %670
        %672 = vrot.lane.b32.xlu0 %v633, 36
        %v673 = vpop.permute.xlu0 %672
        %674 = vrot.lane.b32.xlu0 %v635, 36
        %v675 = vpop.permute.xlu0 %674
        %676 = vrot.lane.b32.xlu0 %v637, 36
        %v677 = vpop.permute.xlu0 %676
        %678 = vrot.lane.b32.xlu0 %v639, 36
        %v679 = vpop.permute.xlu0 %678
        %680 = vrot.lane.b32.xlu0 %v641, 36
        %v681 = vpop.permute.xlu0 %680
        %682 = vrot.lane.b32.xlu0 %v643, 36
        %v683 = vpop.permute.xlu0 %682
        %684 = vrot.lane.b32.xlu0 %v645, 36
        %v685 = vpop.permute.xlu0 %684
        %686 = vrot.lane.b32.xlu0 %v647, 36
        %v687 = vpop.permute.xlu0 %686
        %688 = vrot.lane.b32.xlu0 %v649, 36
        %v689 = vpop.permute.xlu0 %688
        %690 = vrot.lane.b32.xlu0 %v651, 36
        %v691 = vpop.permute.xlu0 %690
        %692 = vrot.lane.b32.xlu0 %v653, 36
        %v693 = vpop.permute.xlu0 %692
        %694 = vrot.lane.b32.xlu0 %v655, 36
        %v695 = vpop.permute.xlu0 %694
        %696 = vrot.lane.b32.xlu0 %v657, 36
        %v697 = vpop.permute.xlu0 %696
        %698 = vrot.lane.b32.xlu0 %v659, 36
        %v699 = vpop.permute.xlu0 %698
        %v720 = vsel %vm391, %v474, %v559
        %v721 = vsel %vm391, %v475, %v561
        %v722 = vsel %vm391, %v476, %v563
        %v723 = vsel %vm391, %v477, %v565
        %v724 = vsel %vm391, %v478, %v567
        %v725 = vsel %vm391, %v479, %v569
        %v726 = vsel %vm391, %v480, %v571
        %v727 = vsel %vm391, %v481, %v573
        %v728 = vsel %vm391, %v482, %v575
        %v729 = vsel %vm391, %v483, %v577
        %v730 = vsel %vm391, %v484, %v579
        %v731 = vsel %vm391, %v485, %v581
        %v732 = vsel %vm391, %v486, %v583
        %v733 = vsel %vm391, %v487, %v585
        %v734 = vsel %vm391, %v488, %v587
        %v735 = vsel %vm391, %v489, %v589
        %v736 = vsel %vm391, %v490, %v591
        %v737 = vsel %vm391, %v491, %v593
        %v738 = vsel %vm391, %v492, %v595
        %v739 = vsel %vm391, %v493, %v597
        %vm740 = vcmask 293888
        %v741 = vsel %vm740, %v720, %v661
        %v742 = vsel %vm740, %v721, %v663
        %v743 = vsel %vm740, %v722, %v665
        %v744 = vsel %vm740, %v723, %v667
        %v745 = vsel %vm740, %v724, %v669
        %v746 = vsel %vm740, %v725, %v671
        %v747 = vsel %vm740, %v726, %v673
        %v748 = vsel %vm740, %v727, %v675
        %v749 = vsel %vm740, %v728, %v677
        %v750 = vsel %vm740, %v729, %v679
        %v751 = vsel %vm740, %v730, %v681
        %v752 = vsel %vm740, %v731, %v683
        %v753 = vsel %vm740, %v732, %v685
        %v754 = vsel %vm740, %v733, %v687
        %v755 = vsel %vm740, %v734, %v689
        %v756 = vsel %vm740, %v735, %v691
        %v757 = vsel %vm740, %v736, %v693
        %v758 = vsel %vm740, %v737, %v695
        %v759 = vsel %vm740, %v738, %v697
        %v760 = vsel %vm740, %v739, %v699
        %v761 = vld [vmem:[%s1] sm:$0xff]
        %v762 = vld [vmem:[%s1 + $0x8] sm:$0xff]
        %v763 = vld [vmem:[%s1 + $0x10] sm:$0xff]
        %v764 = vld [vmem:[%s1 + $0x18] sm:$0xff]
        %v765 = vld [vmem:[%s1 + $0x20] sm:$0xff]
        %v766 = vld [vmem:[%s1 + $0x28] sm:$0xff]
        %v767 = vld [vmem:[%s1 + $0x30] sm:$0x3f]
        %v768 = vld [vmem:[%s2] sm:$0x1]
        %v770 = vperm.slane %v768, 0
        %vm772 = vcmask 441344
        %v774 = vsel %vm772, %v741, 0
        %v777 = vsel %vm772, %v742, 0
        %v780 = vsel %vm772, %v743, 0
        %v783 = vsel %vm772, %v744, 0
        %v786 = vsel %vm772, %v745, 0
        %v789 = vsel %vm772, %v746, 0
        %v792 = vsel %vm772, %v747, 0
        %v795 = vsel %vm772, %v748, 0
        %v798 = vsel %vm772, %v749, 0
        %v801 = vsel %vm772, %v750, 0
        %v804 = vsel %vm772, %v751, 0
        %v807 = vsel %vm772, %v752, 0
        %v810 = vsel %vm772, %v753, 0
        %v813 = vsel %vm772, %v754, 0
        %v816 = vsel %vm772, %v755, 0
        %v819 = vsel %vm772, %v756, 0
        %v822 = vsel %vm772, %v757, 0
        %v825 = vsel %vm772, %v758, 0
        %v828 = vsel %vm772, %v759, 0
        %v831 = vsel %vm772, %v760, 0
        %v834 = vsel %vm618, %v767, 0
        %836 = vmatpush.msra.mxu0 0.0
        %837 = vmatpush.msra.mxu0 0.0
        %838 = vmatpush.msra.mxu0 0.0
        %839 = vmatpush.msra.mxu0 0.0
        %840 = vmatpush.msra.mxu0 0.0
        %841 = vmatpush.msra.mxu0 0.0
        %842 = vmatpush.msra.mxu0 0.0
        %843 = vmatpush.msra.mxu0 0.0
        %844 = vmatpush.msra.mxu0 0.0
        %845 = vmatpush.msra.mxu0 %v834
        %846 = vmatpush.msra.mxu0 %v766
        %847 = vmatpush.msra.mxu0 %v765
        %848 = vmatpush.msra.mxu0 %v764
        %849 = vmatpush.msra.mxu0 %v763
        %850 = vmatpush.msra.mxu0 %v762
        %851 = vmatpush.msra.mxu0 %v761
        %852 = vmatmul.f32.gmra.mxu0 %v774
        %v853 = vpop.f32.mrf.mxu0
        %v854 = vadd.f32 %v770, %v853
        %855 = vmatmul.f32.gmra.mxu0 %v777
        %v856 = vpop.f32.mrf.mxu0
        %v857 = vadd.f32 %v770, %v856
        %858 = vmatmul.f32.gmra.mxu0 %v780
        %v859 = vpop.f32.mrf.mxu0
        %v860 = vadd.f32 %v770, %v859
        %861 = vmatmul.f32.gmra.mxu0 %v783
        %v862 = vpop.f32.mrf.mxu0
        %v863 = vadd.f32 %v770, %v862
        %864 = vmatmul.f32.gmra.mxu0 %v786
        %v865 = vpop.f32.mrf.mxu0
        %v866 = vadd.f32 %v770, %v865
        %867 = vmatmul.f32.gmra.mxu0 %v789
        %v868 = vpop.f32.mrf.mxu0
        %v869 = vadd.f32 %v770, %v868
        %870 = vmatmul.f32.gmra.mxu0 %v792
        %v871 = vpop.f32.mrf.mxu0
        %v872 = vadd.f32 %v770, %v871
        %873 = vmatmul.f32.gmra.mxu0 %v795
        %v874 = vpop.f32.mrf.mxu0
        %v875 = vadd.f32 %v770, %v874
        %876 = vmatmul.f32.gmra.mxu0 %v798
        %v877 = vpop.f32.mrf.mxu0
        %v878 = vadd.f32 %v770, %v877
        %879 = vmatmul.f32.gmra.mxu0 %v801
        %v880 = vpop.f32.mrf.mxu0
        %v881 = vadd.f32 %v770, %v880
        %882 = vmatmul.f32.gmra.mxu0 %v804
        %v883 = vpop.f32.mrf.mxu0
        %v884 = vadd.f32 %v770, %v883
        %885 = vmatmul.f32.gmra.mxu0 %v807
        %v886 = vpop.f32.mrf.mxu0
        %v887 = vadd.f32 %v770, %v886
        %888 = vmatmul.f32.gmra.mxu0 %v810
        %v889 = vpop.f32.mrf.mxu0
        %v890 = vadd.f32 %v770, %v889
        %891 = vmatmul.f32.gmra.mxu0 %v813
        %v892 = vpop.f32.mrf.mxu0
        %v893 = vadd.f32 %v770, %v892
        %894 = vmatmul.f32.gmra.mxu0 %v816
        %v895 = vpop.f32.mrf.mxu0
        %v896 = vadd.f32 %v770, %v895
        %897 = vmatmul.f32.gmra.mxu0 %v819
        %v898 = vpop.f32.mrf.mxu0
        %v899 = vadd.f32 %v770, %v898
        %900 = vmatmul.f32.gmra.mxu0 %v822
        %v901 = vpop.f32.mrf.mxu0
        %v902 = vadd.f32 %v770, %v901
        %903 = vmatmul.f32.gmra.mxu0 %v825
        %v904 = vpop.f32.mrf.mxu0
        %v905 = vadd.f32 %v770, %v904
        %906 = vmatmul.f32.gmra.mxu0 %v828
        %v907 = vpop.f32.mrf.mxu0
        %v908 = vadd.f32 %v770, %v907
        %909 = vmatmul.f32.gmra.mxu0 %v831
        %v910 = vpop.f32.mrf.mxu0
        %v911 = vadd.f32 %v770, %v910
        %912 = vdwg.mxu0
        %v913 = vmax.f32 %v854, 0.0
        %v914 = vmax.f32 %v857, 0.0
        %v915 = vmax.f32 %v860, 0.0
        %v916 = vmax.f32 %v863, 0.0
        %v917 = vmax.f32 %v866, 0.0
        %v918 = vmax.f32 %v869, 0.0
        %v919 = vmax.f32 %v872, 0.0
        %v920 = vmax.f32 %v875, 0.0
        %v921 = vmax.f32 %v878, 0.0
        %v922 = vmax.f32 %v881, 0.0
        %v923 = vmax.f32 %v884, 0.0
        %v924 = vmax.f32 %v887, 0.0
        %v925 = vmax.f32 %v890, 0.0
        %v926 = vmax.f32 %v893, 0.0
        %v927 = vmax.f32 %v896, 0.0
        %v928 = vmax.f32 %v899, 0.0
        %v929 = vmax.f32 %v902, 0.0
        %v930 = vmax.f32 %v905, 0.0
        %v931 = vmax.f32 %v908, 0.0
        %v932 = vmax.f32 %v911, 0.0
        %v933 = vmul.f32 %v913, %v469
        %v934 = vmul.f32 %v914, %v470
        %v935 = vmul.f32 %v915, %v471
        %v936 = vmul.f32 %v916, %v472
        %v937 = vmul.f32 %v917, %v473
        %v938 = vmul.f32 %v918, %v469
        %v939 = vmul.f32 %v919, %v470
        %v940 = vmul.f32 %v920, %v471
        %v941 = vmul.f32 %v921, %v472
        %v942 = vmul.f32 %v922, %v473
        %v943 = vmul.f32 %v923, %v469
        %v944 = vmul.f32 %v924, %v470
        %v945 = vmul.f32 %v925, %v471
        %v946 = vmul.f32 %v926, %v472
        %v947 = vmul.f32 %v927, %v473
        %v948 = vmul.f32 %v928, %v469
        %v949 = vmul.f32 %v929, %v470
        %v950 = vmul.f32 %v930, %v471
        %v951 = vmul.f32 %v931, %v472
        %v952 = vmul.f32 %v932, %v473
        %vm953 = vcmask 523264
        %954 = vst.msk [vmem:[#allocation4 + $0x1] sm:$0xff] %vm953, %v933
        %955 = vst.msk [vmem:[#allocation4 + $0x9] sm:$0xff] %vm953, %v934
        %956 = vst.msk [vmem:[#allocation4 + $0x11] sm:$0xff] %vm953, %v935
        %957 = vst.msk [vmem:[#allocation4 + $0x19] sm:$0xff] %vm953, %v936
        %958 = vst.msk [vmem:[#allocation4 + $0x21] sm:$0xff] %vm953, %v937
        %959 = vst.msk [vmem:[#allocation4 + $0x29] sm:$0xff] %vm953, %v938
        %960 = vst.msk [vmem:[#allocation4 + $0x31] sm:$0xff] %vm953, %v939
        %961 = vst.msk [vmem:[#allocation4 + $0x39] sm:$0xff] %vm953, %v940
        %962 = vst.msk [vmem:[#allocation4 + $0x41] sm:$0xff] %vm953, %v941
        %963 = vst.msk [vmem:[#allocation4 + $0x49] sm:$0xff] %vm953, %v942
        %964 = vst.msk [vmem:[#allocation4 + $0x51] sm:$0xff] %vm953, %v943
        %965 = vst.msk [vmem:[#allocation4 + $0x59] sm:$0xff] %vm953, %v944
        %966 = vst.msk [vmem:[#allocation4 + $0x61] sm:$0xff] %vm953, %v945
        %967 = vst.msk [vmem:[#allocation4 + $0x69] sm:$0xff] %vm953, %v946
        %968 = vst.msk [vmem:[#allocation4 + $0x71] sm:$0xff] %vm953, %v947
        %969 = vst.msk [vmem:[#allocation4 + $0x79] sm:$0xff] %vm953, %v948
        %970 = vst.msk [vmem:[#allocation4 + $0x81] sm:$0xff] %vm953, %v949
        %971 = vst.msk [vmem:[#allocation4 + $0x89] sm:$0xff] %vm953, %v950
        %972 = vst.msk [vmem:[#allocation4 + $0x91] sm:$0xff] %vm953, %v951
        %973 = vst.msk [vmem:[#allocation4 + $0x99] sm:$0xff] %vm953, %v952
        %v974 = vld [vmem:[#allocation4] sm:$0xff]
        %v975 = vld [vmem:[#allocation4 + $0x8] sm:$0xff]
        %v976 = vld [vmem:[#allocation4 + $0x10] sm:$0xff]
        %v977 = vld [vmem:[#allocation4 + $0x18] sm:$0xff]
        %v978 = vld [vmem:[#allocation4 + $0x20] sm:$0xff]
        %v979 = vld [vmem:[#allocation4 + $0x28] sm:$0xff]
        %v980 = vld [vmem:[#allocation4 + $0x30] sm:$0xff]
        %v981 = vld [vmem:[#allocation4 + $0x38] sm:$0xff]
        %v982 = vld [vmem:[#allocation4 + $0x40] sm:$0xff]
        %v983 = vld [vmem:[#allocation4 + $0x48] sm:$0xff]
        %v984 = vld [vmem:[#allocation4 + $0x50] sm:$0xff]
        %v985 = vld [vmem:[#allocation4 + $0x58] sm:$0xff]
        %v986 = vld [vmem:[#allocation4 + $0x60] sm:$0xff]
        %v987 = vld [vmem:[#allocation4 + $0x68] sm:$0xff]
        %v988 = vld [vmem:[#allocation4 + $0x70] sm:$0xff]
        %v989 = vld [vmem:[#allocation4 + $0x78] sm:$0xff]
        %v990 = vld [vmem:[#allocation4 + $0x80] sm:$0xff]
        %v991 = vld [vmem:[#allocation4 + $0x88] sm:$0xff]
        %v992 = vld [vmem:[#allocation4 + $0x90] sm:$0xff]
        %v993 = vld [vmem:[#allocation4 + $0x98] sm:$0xff]
        %v994 = vld [vmem:[#allocation4 + $0xa0] sm:$0x3]
        %v1016 = vrot.slane %v974, 1
        %v1017 = vrot.slane %v975, 1
        %v1018 = vsel %vm516, %v1016, %v1017
        %v1019 = vrot.slane %v976, 1
        %v1020 = vsel %vm516, %v1017, %v1019
        %v1021 = vrot.slane %v977, 1
        %v1022 = vsel %vm516, %v1019, %v1021
        %v1023 = vrot.slane %v978, 1
        %v1024 = vsel %vm516, %v1021, %v1023
        %v1025 = vrot.slane %v979, 1
        %v1026 = vsel %vm516, %v1023, %v1025
        %v1027 = vrot.slane %v980, 1
        %v1028 = vsel %vm516, %v1025, %v1027
        %v1029 = vrot.slane %v981, 1
        %v1030 = vsel %vm516, %v1027, %v1029
        %v1031 = vrot.slane %v982, 1
        %v1032 = vsel %vm516, %v1029, %v1031
        %v1033 = vrot.slane %v983, 1
        %v1034 = vsel %vm516, %v1031, %v1033
        %v1035 = vrot.slane %v984, 1
        %v1036 = vsel %vm516, %v1033, %v1035
        %v1037 = vrot.slane %v985, 1
        %v1038 = vsel %vm516, %v1035, %v1037
        %v1039 = vrot.slane %v986, 1
        %v1040 = vsel %vm516, %v1037, %v1039
        %v1041 = vrot.slane %v987, 1
        %v1042 = vsel %vm516, %v1039, %v1041
        %v1043 = vrot.slane %v988, 1
        %v1044 = vsel %vm516, %v1041, %v1043
        %v1045 = vrot.slane %v989, 1
        %v1046 = vsel %vm516, %v1043, %v1045
        %v1047 = vrot.slane %v990, 1
        %v1048 = vsel %vm516, %v1045, %v1047
        %v1049 = vrot.slane %v991, 1
        %v1050 = vsel %vm516, %v1047, %v1049
        %v1051 = vrot.slane %v992, 1
        %v1052 = vsel %vm516, %v1049, %v1051
        %v1053 = vrot.slane %v993, 1
        %v1054 = vsel %vm516, %v1051, %v1053
        %v1055 = vrot.slane %v994, 1
        %v1056 = vsel %vm516, %v1053, %v1055
        %1057 = vrot.lane.b32.xlu0 %v1018, 64
        %v1058 = vpop.permute.xlu0 %1057
        %1059 = vrot.lane.b32.xlu0 %v1020, 64
        %v1060 = vpop.permute.xlu0 %1059
        %1061 = vrot.lane.b32.xlu0 %v1022, 64
        %v1062 = vpop.permute.xlu0 %1061
        %1063 = vrot.lane.b32.xlu0 %v1024, 64
        %v1064 = vpop.permute.xlu0 %1063
        %1065 = vrot.lane.b32.xlu0 %v1026, 64
        %v1066 = vpop.permute.xlu0 %1065
        %1067 = vrot.lane.b32.xlu0 %v1028, 64
        %v1068 = vpop.permute.xlu0 %1067
        %1069 = vrot.lane.b32.xlu0 %v1030, 64
        %v1070 = vpop.permute.xlu0 %1069
        %1071 = vrot.lane.b32.xlu0 %v1032, 64
        %v1072 = vpop.permute.xlu0 %1071
        %1073 = vrot.lane.b32.xlu0 %v1034, 64
        %v1074 = vpop.permute.xlu0 %1073
        %1075 = vrot.lane.b32.xlu0 %v1036, 64
        %v1076 = vpop.permute.xlu0 %1075
        %1077 = vrot.lane.b32.xlu0 %v1038, 64
        %v1078 = vpop.permute.xlu0 %1077
        %1079 = vrot.lane.b32.xlu0 %v1040, 64
        %v1080 = vpop.permute.xlu0 %1079
        %1081 = vrot.lane.b32.xlu0 %v1042, 64
        %v1082 = vpop.permute.xlu0 %1081
        %1083 = vrot.lane.b32.xlu0 %v1044, 64
        %v1084 = vpop.permute.xlu0 %1083
        %1085 = vrot.lane.b32.xlu0 %v1046, 64
        %v1086 = vpop.permute.xlu0 %1085
        %1087 = vrot.lane.b32.xlu0 %v1048, 64
        %v1088 = vpop.permute.xlu0 %1087
        %1089 = vrot.lane.b32.xlu0 %v1050, 64
        %v1090 = vpop.permute.xlu0 %1089
        %1091 = vrot.lane.b32.xlu0 %v1052, 64
        %v1092 = vpop.permute.xlu0 %1091
        %1093 = vrot.lane.b32.xlu0 %v1054, 64
        %v1094 = vpop.permute.xlu0 %1093
        %1095 = vrot.lane.b32.xlu0 %v1056, 64
        %v1096 = vpop.permute.xlu0 %1095
        %v1117 = vrot.slane %v974, 2
        %v1118 = vrot.slane %v975, 2
        %v1119 = vsel %vm618, %v1117, %v1118
        %v1120 = vrot.slane %v976, 2
        %v1121 = vsel %vm618, %v1118, %v1120
        %v1122 = vrot.slane %v977, 2
        %v1123 = vsel %vm618, %v1120, %v1122
        %v1124 = vrot.slane %v978, 2
        %v1125 = vsel %vm618, %v1122, %v1124
        %v1126 = vrot.slane %v979, 2
        %v1127 = vsel %vm618, %v1124, %v1126
        %v1128 = vrot.slane %v980, 2
        %v1129 = vsel %vm618, %v1126, %v1128
        %v1130 = vrot.slane %v981, 2
        %v1131 = vsel %vm618, %v1128, %v1130
        %v1132 = vrot.slane %v982, 2
        %v1133 = vsel %vm618, %v1130, %v1132
        %v1134 = vrot.slane %v983, 2
        %v1135 = vsel %vm618, %v1132, %v1134
        %v1136 = vrot.slane %v984, 2
        %v1137 = vsel %vm618, %v1134, %v1136
        %v1138 = vrot.slane %v985, 2
        %v1139 = vsel %vm618, %v1136, %v1138
        %v1140 = vrot.slane %v986, 2
        %v1141 = vsel %vm618, %v1138, %v1140
        %v1142 = vrot.slane %v987, 2
        %v1143 = vsel %vm618, %v1140, %v1142
        %v1144 = vrot.slane %v988, 2
        %v1145 = vsel %vm618, %v1142, %v1144
        %v1146 = vrot.slane %v989, 2
        %v1147 = vsel %vm618, %v1144, %v1146
        %v1148 = vrot.slane %v990, 2
        %v1149 = vsel %vm618, %v1146, %v1148
        %v1150 = vrot.slane %v991, 2
        %v1151 = vsel %vm618, %v1148, %v1150
        %v1152 = vrot.slane %v992, 2
        %v1153 = vsel %vm618, %v1150, %v1152
        %v1154 = vrot.slane %v993, 2
        %v1155 = vsel %vm618, %v1152, %v1154
        %v1156 = vrot.slane %v994, 2
        %v1157 = vsel %vm618, %v1154, %v1156
        %v1158 = vsel %vm953, %v974, %v1058
        %v1159 = vsel %vm953, %v975, %v1060
        %v1160 = vsel %vm953, %v976, %v1062
        %v1161 = vsel %vm953, %v977, %v1064
        %v1162 = vsel %vm953, %v978, %v1066
        %v1163 = vsel %vm953, %v979, %v1068
        %v1164 = vsel %vm953, %v980, %v1070
        %v1165 = vsel %vm953, %v981, %v1072
        %v1166 = vsel %vm953, %v982, %v1074
        %v1167 = vsel %vm953, %v983, %v1076
        %v1168 = vsel %vm953, %v984, %v1078
        %v1169 = vsel %vm953, %v985, %v1080
        %v1170 = vsel %vm953, %v986, %v1082
        %v1171 = vsel %vm953, %v987, %v1084
        %v1172 = vsel %vm953, %v988, %v1086
        %v1173 = vsel %vm953, %v989, %v1088
        %v1174 = vsel %vm953, %v990, %v1090
        %v1175 = vsel %vm953, %v991, %v1092
        %v1176 = vsel %vm953, %v992, %v1094
        %v1177 = vsel %vm953, %v993, %v1096
        %v1178 = vld [vmem:[#allocation6] sm:$0xff]
        %v1179 = vld [vmem:[#allocation6 + $0x8] sm:$0xff]
        %v1180 = vld [vmem:[#allocation6 + $0x10] sm:$0xff]
        %v1181 = vld [vmem:[#allocation6 + $0x18] sm:$0xff]
        %v1182 = vld [vmem:[#allocation6 + $0x20] sm:$0xff]
        %v1183 = vld [vmem:[#allocation6 + $0x28] sm:$0xff]
        %v1184 = vld [vmem:[#allocation6 + $0x30] sm:$0xff]
        %v1185 = vld [vmem:[#allocation6 + $0x38] sm:$0xff]
        %v1186 = vld [vmem:[#allocation6 + $0x40] sm:$0xff]
        %v1187 = vld [vmem:[#allocation6 + $0x48] sm:$0xff]
        %v1188 = vld [vmem:[#allocation6 + $0x50] sm:$0xff]
        %v1189 = vld [vmem:[#allocation6 + $0x58] sm:$0xff]
        %v1190 = vld [vmem:[#allocation6 + $0x60] sm:$0xff]
        %v1191 = vld [vmem:[#allocation6 + $0x68] sm:$0xff]
        %v1192 = vld [vmem:[#allocation6 + $0x70] sm:$0xff]
        %v1193 = vld [vmem:[#allocation6 + $0x78] sm:$0xff]
        %v1194 = vld [vmem:[#allocation6 + $0x80] sm:$0xff]
        %v1195 = vld [vmem:[#allocation6 + $0x88] sm:$0xff]
        %v1196 = vld [vmem:[#allocation6 + $0x90] sm:$0xff]
        %v1197 = vld [vmem:[#allocation6 + $0x98] sm:$0xff]
        %v1198 = vld [vmem:[#allocation6 + $0xa0] sm:$0xff]
        %v1199 = vld [vmem:[#allocation6 + $0xa8] sm:$0xff]
        %v1200 = vld [vmem:[#allocation6 + $0xb0] sm:$0xff]
        %v1201 = vld [vmem:[#allocation6 + $0xb8] sm:$0xff]
        %v1202 = vld [vmem:[%s4] sm:$0x1]
        %v1204 = vperm.slane %v1202, 0
        %v1206 = vsel %vm953, %v1119, 0
        %v1208 = vsel %vm953, %v1121, 0
        %v1210 = vsel %vm953, %v1123, 0
        %v1212 = vsel %vm953, %v1125, 0
        %v1214 = vsel %vm953, %v1127, 0
        %v1216 = vsel %vm953, %v1129, 0
        %v1218 = vsel %vm953, %v1131, 0
        %v1220 = vsel %vm953, %v1133, 0
        %v1222 = vsel %vm953, %v1135, 0
        %v1224 = vsel %vm953, %v1137, 0
        %v1226 = vsel %vm953, %v1139, 0
        %v1228 = vsel %vm953, %v1141, 0
        %v1230 = vsel %vm953, %v1143, 0
        %v1232 = vsel %vm953, %v1145, 0
        %v1234 = vsel %vm953, %v1147, 0
        %v1236 = vsel %vm953, %v1149, 0
        %v1238 = vsel %vm953, %v1151, 0
        %v1240 = vsel %vm953, %v1153, 0
        %v1242 = vsel %vm953, %v1155, 0
        %v1244 = vsel %vm953, %v1157, 0
        %1246 = vmatpush.msra.mxu0 %v1193
        %1247 = vmatpush.msra.mxu0 %v1192
        %1248 = vmatpush.msra.mxu0 %v1191
        %1249 = vmatpush.msra.mxu0 %v1190
        %1250 = vmatpush.msra.mxu0 %v1189
        %1251 = vmatpush.msra.mxu0 %v1188
        %1252 = vmatpush.msra.mxu0 %v1187
        %1253 = vmatpush.msra.mxu0 %v1186
        %1254 = vmatpush.msra.mxu0 %v1185
        %1255 = vmatpush.msra.mxu0 %v1184
        %1256 = vmatpush.msra.mxu0 %v1183
        %1257 = vmatpush.msra.mxu0 %v1182
        %1258 = vmatpush.msra.mxu0 %v1181
        %1259 = vmatpush.msra.mxu0 %v1180
        %1260 = vmatpush.msra.mxu0 %v1179
        %1261 = vmatpush.msra.mxu0 %v1178
        %1262 = vmatmul.f32.gmra.mxu0 %v1158
        %v1263 = vpop.f32.mrf.mxu0
        %v1264 = vadd.f32 %v1204, %v1263
        %1265 = vmatmul.f32.gmra.mxu0 %v1159
        %v1266 = vpop.f32.mrf.mxu0
        %v1267 = vadd.f32 %v1204, %v1266
        %1268 = vmatmul.f32.gmra.mxu0 %v1160
        %v1269 = vpop.f32.mrf.mxu0
        %v1270 = vadd.f32 %v1204, %v1269
        %1271 = vmatmul.f32.gmra.mxu0 %v1161
        %v1272 = vpop.f32.mrf.mxu0
        %v1273 = vadd.f32 %v1204, %v1272
        %1274 = vmatmul.f32.gmra.mxu0 %v1162
        %v1275 = vpop.f32.mrf.mxu0
        %v1276 = vadd.f32 %v1204, %v1275
        %1277 = vmatmul.f32.gmra.mxu0 %v1163
        %v1278 = vpop.f32.mrf.mxu0
        %v1279 = vadd.f32 %v1204, %v1278
        %1280 = vmatmul.f32.gmra.mxu0 %v1164
        %v1281 = vpop.f32.mrf.mxu0
        %v1282 = vadd.f32 %v1204, %v1281
        %1283 = vmatmul.f32.gmra.mxu0 %v1165
        %v1284 = vpop.f32.mrf.mxu0
        %v1285 = vadd.f32 %v1204, %v1284
        %1286 = vmatmul.f32.gmra.mxu0 %v1166
        %v1287 = vpop.f32.mrf.mxu0
        %v1288 = vadd.f32 %v1204, %v1287
        %1289 = vmatmul.f32.gmra.mxu0 %v1167
        %v1290 = vpop.f32.mrf.mxu0
        %v1291 = vadd.f32 %v1204, %v1290
        %1292 = vmatmul.f32.gmra.mxu0 %v1168
        %v1293 = vpop.f32.mrf.mxu0
        %v1294 = vadd.f32 %v1204, %v1293
        %1295 = vmatmul.f32.gmra.mxu0 %v1169
        %v1296 = vpop.f32.mrf.mxu0
        %v1297 = vadd.f32 %v1204, %v1296
        %1298 = vmatmul.f32.gmra.mxu0 %v1170
        %v1299 = vpop.f32.mrf.mxu0
        %v1300 = vadd.f32 %v1204, %v1299
        %1301 = vmatmul.f32.gmra.mxu0 %v1171
        %v1302 = vpop.f32.mrf.mxu0
        %v1303 = vadd.f32 %v1204, %v1302
        %1304 = vmatmul.f32.gmra.mxu0 %v1172
        %v1305 = vpop.f32.mrf.mxu0
        %v1306 = vadd.f32 %v1204, %v1305
        %1307 = vmatmul.f32.gmra.mxu0 %v1173
        %v1308 = vpop.f32.mrf.mxu0
        %v1309 = vadd.f32 %v1204, %v1308
        %1310 = vmatmul.f32.gmra.mxu0 %v1174
        %v1311 = vpop.f32.mrf.mxu0
        %v1312 = vadd.f32 %v1204, %v1311
        %1313 = vmatmul.f32.gmra.mxu0 %v1175
        %v1314 = vpop.f32.mrf.mxu0
        %v1315 = vadd.f32 %v1204, %v1314
        %1316 = vmatmul.f32.gmra.mxu0 %v1176
        %v1317 = vpop.f32.mrf.mxu0
        %v1318 = vadd.f32 %v1204, %v1317
        %1319 = vmatmul.f32.gmra.mxu0 %v1177
        %v1320 = vpop.f32.mrf.mxu0
        %v1321 = vadd.f32 %v1204, %v1320
        %1322 = vdwg.mxu0
        %1323 = vmatpush.msra.mxu0 0.0
        %1324 = vmatpush.msra.mxu0 0.0
        %1325 = vmatpush.msra.mxu0 0.0
        %1326 = vmatpush.msra.mxu0 0.0
        %1327 = vmatpush.msra.mxu0 0.0
        %1328 = vmatpush.msra.mxu0 0.0
        %1329 = vmatpush.msra.mxu0 0.0
        %1330 = vmatpush.msra.mxu0 0.0
        %1331 = vmatpush.msra.mxu0 %v1201
        %1332 = vmatpush.msra.mxu0 %v1200
        %1333 = vmatpush.msra.mxu0 %v1199
        %1334 = vmatpush.msra.mxu0 %v1198
        %1335 = vmatpush.msra.mxu0 %v1197
        %1336 = vmatpush.msra.mxu0 %v1196
        %1337 = vmatpush.msra.mxu0 %v1195
        %1338 = vmatpush.msra.mxu0 %v1194
        %1339 = vmatmul.f32.gmra.mxu0 %v1206
        %v1340 = vpop.f32.mrf.mxu0
        %v1341 = vadd.f32 %v1264, %v1340
        %1342 = vmatmul.f32.gmra.mxu0 %v1208
        %v1343 = vpop.f32.mrf.mxu0
        %v1344 = vadd.f32 %v1267, %v1343
        %1345 = vmatmul.f32.gmra.mxu0 %v1210
        %v1346 = vpop.f32.mrf.mxu0
        %v1347 = vadd.f32 %v1270, %v1346
        %1348 = vmatmul.f32.gmra.mxu0 %v1212
        %v1349 = vpop.f32.mrf.mxu0
        %v1350 = vadd.f32 %v1273, %v1349
        %1351 = vmatmul.f32.gmra.mxu0 %v1214
        %v1352 = vpop.f32.mrf.mxu0
        %v1353 = vadd.f32 %v1276, %v1352
        %1354 = vmatmul.f32.gmra.mxu0 %v1216
        %v1355 = vpop.f32.mrf.mxu0
        %v1356 = vadd.f32 %v1279, %v1355
        %1357 = vmatmul.f32.gmra.mxu0 %v1218
        %v1358 = vpop.f32.mrf.mxu0
        %v1359 = vadd.f32 %v1282, %v1358
        %1360 = vmatmul.f32.gmra.mxu0 %v1220
        %v1361 = vpop.f32.mrf.mxu0
        %v1362 = vadd.f32 %v1285, %v1361
        %1363 = vmatmul.f32.gmra.mxu0 %v1222
        %v1364 = vpop.f32.mrf.mxu0
        %v1365 = vadd.f32 %v1288, %v1364
        %1366 = vmatmul.f32.gmra.mxu0 %v1224
        %v1367 = vpop.f32.mrf.mxu0
        %v1368 = vadd.f32 %v1291, %v1367
        %1369 = vmatmul.f32.gmra.mxu0 %v1226
        %v1370 = vpop.f32.mrf.mxu0
        %v1371 = vadd.f32 %v1294, %v1370
        %1372 = vmatmul.f32.gmra.mxu0 %v1228
        %v1373 = vpop.f32.mrf.mxu0
        %v1374 = vadd.f32 %v1297, %v1373
        %1375 = vmatmul.f32.gmra.mxu0 %v1230
        %v1376 = vpop.f32.mrf.mxu0
        %v1377 = vadd.f32 %v1300, %v1376
        %1378 = vmatmul.f32.gmra.mxu0 %v1232
        %v1379 = vpop.f32.mrf.mxu0
        %v1380 = vadd.f32 %v1303, %v1379
        %1381 = vmatmul.f32.gmra.mxu0 %v1234
        %v1382 = vpop.f32.mrf.mxu0
        %v1383 = vadd.f32 %v1306, %v1382
        %1384 = vmatmul.f32.gmra.mxu0 %v1236
        %v1385 = vpop.f32.mrf.mxu0
        %v1386 = vadd.f32 %v1309, %v1385
        %1387 = vmatmul.f32.gmra.mxu0 %v1238
        %v1388 = vpop.f32.mrf.mxu0
        %v1389 = vadd.f32 %v1312, %v1388
        %1390 = vmatmul.f32.gmra.mxu0 %v1240
        %v1391 = vpop.f32.mrf.mxu0
        %v1392 = vadd.f32 %v1315, %v1391
        %1393 = vmatmul.f32.gmra.mxu0 %v1242
        %v1394 = vpop.f32.mrf.mxu0
        %v1395 = vadd.f32 %v1318, %v1394
        %1396 = vmatmul.f32.gmra.mxu0 %v1244
        %v1397 = vpop.f32.mrf.mxu0
        %v1398 = vadd.f32 %v1321, %v1397
        %1399 = vdwg.mxu0
        %v1400 = vmax.f32 %v1341, 0.0
        %v1401 = vmax.f32 %v1344, 0.0
        %v1402 = vmax.f32 %v1347, 0.0
        %v1403 = vmax.f32 %v1350, 0.0
        %v1404 = vmax.f32 %v1353, 0.0
        %v1405 = vmax.f32 %v1356, 0.0
        %v1406 = vmax.f32 %v1359, 0.0
        %v1407 = vmax.f32 %v1362, 0.0
        %v1408 = vmax.f32 %v1365, 0.0
        %v1409 = vmax.f32 %v1368, 0.0
        %v1410 = vmax.f32 %v1371, 0.0
        %v1411 = vmax.f32 %v1374, 0.0
        %v1412 = vmax.f32 %v1377, 0.0
        %v1413 = vmax.f32 %v1380, 0.0
        %v1414 = vmax.f32 %v1383, 0.0
        %v1415 = vmax.f32 %v1386, 0.0
        %v1416 = vmax.f32 %v1389, 0.0
        %v1417 = vmax.f32 %v1392, 0.0
        %v1418 = vmax.f32 %v1395, 0.0
        %v1419 = vmax.f32 %v1398, 0.0
        %v1420 = vmul.f32 %v1400, %v469
        %v1421 = vmul.f32 %v1401, %v470
        %v1422 = vmul.f32 %v1402, %v471
        %v1423 = vmul.f32 %v1403, %v472
        %v1424 = vmul.f32 %v1404, %v473
        %v1425 = vmul.f32 %v1405, %v469
        %v1426 = vmul.f32 %v1406, %v470
        %v1427 = vmul.f32 %v1407, %v471
        %v1428 = vmul.f32 %v1408, %v472
        %v1429 = vmul.f32 %v1409, %v473
        %v1430 = vmul.f32 %v1410, %v469
        %v1431 = vmul.f32 %v1411, %v470
        %v1432 = vmul.f32 %v1412, %v471
        %v1433 = vmul.f32 %v1413, %v472
        %v1434 = vmul.f32 %v1414, %v473
        %v1435 = vmul.f32 %v1415, %v469
        %v1436 = vmul.f32 %v1416, %v470
        %v1437 = vmul.f32 %v1417, %v471
        %v1438 = vmul.f32 %v1418, %v472
        %v1439 = vmul.f32 %v1419, %v473
        %1440 = vst.msk [vmem:[#allocation5 + $0x1] sm:$0xff] %vm953, %v1420
        %1441 = vst.msk [vmem:[#allocation5 + $0x9] sm:$0xff] %vm953, %v1421
        %1442 = vst.msk [vmem:[#allocation5 + $0x11] sm:$0xff] %vm953, %v1422
        %1443 = vst.msk [vmem:[#allocation5 + $0x19] sm:$0xff] %vm953, %v1423
        %1444 = vst.msk [vmem:[#allocation5 + $0x21] sm:$0xff] %vm953, %v1424
        %1445 = vst.msk [vmem:[#allocation5 + $0x29] sm:$0xff] %vm953, %v1425
        %1446 = vst.msk [vmem:[#allocation5 + $0x31] sm:$0xff] %vm953, %v1426
        %1447 = vst.msk [vmem:[#allocation5 + $0x39] sm:$0xff] %vm953, %v1427
        %1448 = vst.msk [vmem:[#allocation5 + $0x41] sm:$0xff] %vm953, %v1428
        %1449 = vst.msk [vmem:[#allocation5 + $0x49] sm:$0xff] %vm953, %v1429
        %1450 = vst.msk [vmem:[#allocation5 + $0x51] sm:$0xff] %vm953, %v1430
        %1451 = vst.msk [vmem:[#allocation5 + $0x59] sm:$0xff] %vm953, %v1431
        %1452 = vst.msk [vmem:[#allocation5 + $0x61] sm:$0xff] %vm953, %v1432
        %1453 = vst.msk [vmem:[#allocation5 + $0x69] sm:$0xff] %vm953, %v1433
        %1454 = vst.msk [vmem:[#allocation5 + $0x71] sm:$0xff] %vm953, %v1434
        %1455 = vst.msk [vmem:[#allocation5 + $0x79] sm:$0xff] %vm953, %v1435
        %1456 = vst.msk [vmem:[#allocation5 + $0x81] sm:$0xff] %vm953, %v1436
        %1457 = vst.msk [vmem:[#allocation5 + $0x89] sm:$0xff] %vm953, %v1437
        %1458 = vst.msk [vmem:[#allocation5 + $0x91] sm:$0xff] %vm953, %v1438
        %1459 = vst.msk [vmem:[#allocation5 + $0x99] sm:$0xff] %vm953, %v1439
        %v1460 = vld [vmem:[#allocation5] sm:$0xff]
        %v1461 = vld [vmem:[#allocation5 + $0x8] sm:$0xff]
        %v1462 = vld [vmem:[#allocation5 + $0x10] sm:$0xff]
        %v1463 = vld [vmem:[#allocation5 + $0x18] sm:$0xff]
        %v1464 = vld [vmem:[#allocation5 + $0x20] sm:$0xff]
        %v1465 = vld [vmem:[#allocation5 + $0x28] sm:$0xff]
        %v1466 = vld [vmem:[#allocation5 + $0x30] sm:$0xff]
        %v1467 = vld [vmem:[#allocation5 + $0x38] sm:$0xff]
        %v1468 = vld [vmem:[#allocation5 + $0x40] sm:$0xff]
        %v1469 = vld [vmem:[#allocation5 + $0x48] sm:$0xff]
        %v1470 = vld [vmem:[#allocation5 + $0x50] sm:$0xff]
        %v1471 = vld [vmem:[#allocation5 + $0x58] sm:$0xff]
        %v1472 = vld [vmem:[#allocation5 + $0x60] sm:$0xff]
        %v1473 = vld [vmem:[#allocation5 + $0x68] sm:$0xff]
        %v1474 = vld [vmem:[#allocation5 + $0x70] sm:$0xff]
        %v1475 = vld [vmem:[#allocation5 + $0x78] sm:$0xff]
        %v1476 = vld [vmem:[#allocation5 + $0x80] sm:$0xff]
        %v1477 = vld [vmem:[#allocation5 + $0x88] sm:$0xff]
        %v1478 = vld [vmem:[#allocation5 + $0x90] sm:$0xff]
        %v1479 = vld [vmem:[#allocation5 + $0x98] sm:$0xff]
        %v1480 = vld [vmem:[#allocation5 + $0xa0] sm:$0x3]
        %v1502 = vrot.slane %v1460, 1
        %v1503 = vrot.slane %v1461, 1
        %v1504 = vsel %vm516, %v1502, %v1503
        %v1505 = vrot.slane %v1462, 1
        %v1506 = vsel %vm516, %v1503, %v1505
        %v1507 = vrot.slane %v1463, 1
        %v1508 = vsel %vm516, %v1505, %v1507
        %v1509 = vrot.slane %v1464, 1
        %v1510 = vsel %vm516, %v1507, %v1509
        %v1511 = vrot.slane %v1465, 1
        %v1512 = vsel %vm516, %v1509, %v1511
        %v1513 = vrot.slane %v1466, 1
        %v1514 = vsel %vm516, %v1511, %v1513
        %v1515 = vrot.slane %v1467, 1
        %v1516 = vsel %vm516, %v1513, %v1515
        %v1517 = vrot.slane %v1468, 1
        %v1518 = vsel %vm516, %v1515, %v1517
        %v1519 = vrot.slane %v1469, 1
        %v1520 = vsel %vm516, %v1517, %v1519
        %v1521 = vrot.slane %v1470, 1
        %v1522 = vsel %vm516, %v1519, %v1521
        %v1523 = vrot.slane %v1471, 1
        %v1524 = vsel %vm516, %v1521, %v1523
        %v1525 = vrot.slane %v1472, 1
        %v1526 = vsel %vm516, %v1523, %v1525
        %v1527 = vrot.slane %v1473, 1
        %v1528 = vsel %vm516, %v1525, %v1527
        %v1529 = vrot.slane %v1474, 1
        %v1530 = vsel %vm516, %v1527, %v1529
        %v1531 = vrot.slane %v1475, 1
        %v1532 = vsel %vm516, %v1529, %v1531
        %v1533 = vrot.slane %v1476, 1
        %v1534 = vsel %vm516, %v1531, %v1533
        %v1535 = vrot.slane %v1477, 1
        %v1536 = vsel %vm516, %v1533, %v1535
        %v1537 = vrot.slane %v1478, 1
        %v1538 = vsel %vm516, %v1535, %v1537
        %v1539 = vrot.slane %v1479, 1
        %v1540 = vsel %vm516, %v1537, %v1539
        %v1541 = vrot.slane %v1480, 1
        %v1542 = vsel %vm516, %v1539, %v1541
        %1543 = vrot.lane.b32.xlu0 %v1504, 64
        %v1544 = vpop.permute.xlu0 %1543
        %1545 = vrot.lane.b32.xlu0 %v1506, 64
        %v1546 = vpop.permute.xlu0 %1545
        %1547 = vrot.lane.b32.xlu0 %v1508, 64
        %v1548 = vpop.permute.xlu0 %1547
        %1549 = vrot.lane.b32.xlu0 %v1510, 64
        %v1550 = vpop.permute.xlu0 %1549
        %1551 = vrot.lane.b32.xlu0 %v1512, 64
        %v1552 = vpop.permute.xlu0 %1551
        %1553 = vrot.lane.b32.xlu0 %v1514, 64
        %v1554 = vpop.permute.xlu0 %1553
        %1555 = vrot.lane.b32.xlu0 %v1516, 64
        %v1556 = vpop.permute.xlu0 %1555
        %1557 = vrot.lane.b32.xlu0 %v1518, 64
        %v1558 = vpop.permute.xlu0 %1557
        %1559 = vrot.lane.b32.xlu0 %v1520, 64
        %v1560 = vpop.permute.xlu0 %1559
        %1561 = vrot.lane.b32.xlu0 %v1522, 64
        %v1562 = vpop.permute.xlu0 %1561
        %1563 = vrot.lane.b32.xlu0 %v1524, 64
        %v1564 = vpop.permute.xlu0 %1563
        %1565 = vrot.lane.b32.xlu0 %v1526, 64
        %v1566 = vpop.permute.xlu0 %1565
        %1567 = vrot.lane.b32.xlu0 %v1528, 64
        %v1568 = vpop.permute.xlu0 %1567
        %1569 = vrot.lane.b32.xlu0 %v1530, 64
        %v1570 = vpop.permute.xlu0 %1569
        %1571 = vrot.lane.b32.xlu0 %v1532, 64
        %v1572 = vpop.permute.xlu0 %1571
        %1573 = vrot.lane.b32.xlu0 %v1534, 64
        %v1574 = vpop.permute.xlu0 %1573
        %1575 = vrot.lane.b32.xlu0 %v1536, 64
        %v1576 = vpop.permute.xlu0 %1575
        %1577 = vrot.lane.b32.xlu0 %v1538, 64
        %v1578 = vpop.permute.xlu0 %1577
        %1579 = vrot.lane.b32.xlu0 %v1540, 64
        %v1580 = vpop.permute.xlu0 %1579
        %1581 = vrot.lane.b32.xlu0 %v1542, 64
        %v1582 = vpop.permute.xlu0 %1581
        %v1603 = vrot.slane %v1460, 2
        %v1604 = vrot.slane %v1461, 2
        %v1605 = vsel %vm618, %v1603, %v1604
        %v1606 = vrot.slane %v1462, 2
        %v1607 = vsel %vm618, %v1604, %v1606
        %v1608 = vrot.slane %v1463, 2
        %v1609 = vsel %vm618, %v1606, %v1608
        %v1610 = vrot.slane %v1464, 2
        %v1611 = vsel %vm618, %v1608, %v1610
        %v1612 = vrot.slane %v1465, 2
        %v1613 = vsel %vm618, %v1610, %v1612
        %v1614 = vrot.slane %v1466, 2
        %v1615 = vsel %vm618, %v1612, %v1614
        %v1616 = vrot.slane %v1467, 2
        %v1617 = vsel %vm618, %v1614, %v1616
        %v1618 = vrot.slane %v1468, 2
        %v1619 = vsel %vm618, %v1616, %v1618
        %v1620 = vrot.slane %v1469, 2
        %v1621 = vsel %vm618, %v1618, %v1620
        %v1622 = vrot.slane %v1470, 2
        %v1623 = vsel %vm618, %v1620, %v1622
        %v1624 = vrot.slane %v1471, 2
        %v1625 = vsel %vm618, %v1622, %v1624
        %v1626 = vrot.slane %v1472, 2
        %v1627 = vsel %vm618, %v1624, %v1626
        %v1628 = vrot.slane %v1473, 2
        %v1629 = vsel %vm618, %v1626, %v1628
        %v1630 = vrot.slane %v1474, 2
        %v1631 = vsel %vm618, %v1628, %v1630
        %v1632 = vrot.slane %v1475, 2
        %v1633 = vsel %vm618, %v1630, %v1632
        %v1634 = vrot.slane %v1476, 2
        %v1635 = vsel %vm618, %v1632, %v1634
        %v1636 = vrot.slane %v1477, 2
        %v1637 = vsel %vm618, %v1634, %v1636
        %v1638 = vrot.slane %v1478, 2
        %v1639 = vsel %vm618, %v1636, %v1638
        %v1640 = vrot.slane %v1479, 2
        %v1641 = vsel %vm618, %v1638, %v1640
        %v1642 = vrot.slane %v1480, 2
        %v1643 = vsel %vm618, %v1640, %v1642
        %v1644 = vsel %vm953, %v1460, %v1544
        %v1645 = vsel %vm953, %v1461, %v1546
        %v1646 = vsel %vm953, %v1462, %v1548
        %v1647 = vsel %vm953, %v1463, %v1550
        %v1648 = vsel %vm953, %v1464, %v1552
        %v1649 = vsel %vm953, %v1465, %v1554
        %v1650 = vsel %vm953, %v1466, %v1556
        %v1651 = vsel %vm953, %v1467, %v1558
        %v1652 = vsel %vm953, %v1468, %v1560
        %v1653 = vsel %vm953, %v1469, %v1562
        %v1654 = vsel %vm953, %v1470, %v1564
        %v1655 = vsel %vm953, %v1471, %v1566
        %v1656 = vsel %vm953, %v1472, %v1568
        %v1657 = vsel %vm953, %v1473, %v1570
        %v1658 = vsel %vm953, %v1474, %v1572
        %v1659 = vsel %vm953, %v1475, %v1574
        %v1660 = vsel %vm953, %v1476, %v1576
        %v1661 = vsel %vm953, %v1477, %v1578
        %v1662 = vsel %vm953, %v1478, %v1580
        %v1663 = vsel %vm953, %v1479, %v1582
        %v1664 = vld [vmem:[%s5] sm:$0xff]
        %v1665 = vld [vmem:[%s5 + $0x8] sm:$0xff]
        %v1666 = vld [vmem:[%s5 + $0x10] sm:$0xff]
        %v1667 = vld [vmem:[%s5 + $0x18] sm:$0xff]
        %v1668 = vld [vmem:[%s5 + $0x20] sm:$0xff]
        %v1669 = vld [vmem:[%s5 + $0x28] sm:$0xff]
        %v1670 = vld [vmem:[%s5 + $0x30] sm:$0xff]
        %v1671 = vld [vmem:[%s5 + $0x38] sm:$0xff]
        %v1672 = vld [vmem:[%s5 + $0x40] sm:$0xff]
        %v1673 = vld [vmem:[%s5 + $0x48] sm:$0xff]
        %v1674 = vld [vmem:[%s5 + $0x50] sm:$0xff]
        %v1675 = vld [vmem:[%s5 + $0x58] sm:$0xff]
        %v1676 = vld [vmem:[%s5 + $0x60] sm:$0xff]
        %v1677 = vld [vmem:[%s5 + $0x68] sm:$0xff]
        %v1678 = vld [vmem:[%s5 + $0x70] sm:$0xff]
        %v1679 = vld [vmem:[%s5 + $0x78] sm:$0xff]
        %v1680 = vld [vmem:[%s5 + $0x80] sm:$0xff]
        %v1681 = vld [vmem:[%s5 + $0x88] sm:$0xff]
        %v1682 = vld [vmem:[%s5 + $0x90] sm:$0xff]
        %v1683 = vld [vmem:[%s5 + $0x98] sm:$0xff]
        %v1684 = vld [vmem:[%s5 + $0xa0] sm:$0xff]
        %v1685 = vld [vmem:[%s5 + $0xa8] sm:$0xff]
        %v1686 = vld [vmem:[%s5 + $0xb0] sm:$0xff]
        %v1687 = vld [vmem:[%s5 + $0xb8] sm:$0xff]
        %v1688 = vld [vmem:[%s6] sm:$0x1]
        %v1690 = vperm.slane %v1688, 0
        %v1692 = vsel %vm953, %v1605, 0
        %v1694 = vsel %vm953, %v1607, 0
        %v1696 = vsel %vm953, %v1609, 0
        %v1698 = vsel %vm953, %v1611, 0
        %v1700 = vsel %vm953, %v1613, 0
        %v1702 = vsel %vm953, %v1615, 0
        %v1704 = vsel %vm953, %v1617, 0
        %v1706 = vsel %vm953, %v1619, 0
        %v1708 = vsel %vm953, %v1621, 0
        %v1710 = vsel %vm953, %v1623, 0
        %v1712 = vsel %vm953, %v1625, 0
        %v1714 = vsel %vm953, %v1627, 0
        %v1716 = vsel %vm953, %v1629, 0
        %v1718 = vsel %vm953, %v1631, 0
        %v1720 = vsel %vm953, %v1633, 0
        %v1722 = vsel %vm953, %v1635, 0
        %v1724 = vsel %vm953, %v1637, 0
        %v1726 = vsel %vm953, %v1639, 0
        %v1728 = vsel %vm953, %v1641, 0
        %v1730 = vsel %vm953, %v1643, 0
        %1732 = vmatpush.msra.mxu0 %v1679
        %1733 = vmatpush.msra.mxu0 %v1678
        %1734 = vmatpush.msra.mxu0 %v1677
        %1735 = vmatpush.msra.mxu0 %v1676
        %1736 = vmatpush.msra.mxu0 %v1675
        %1737 = vmatpush.msra.mxu0 %v1674
        %1738 = vmatpush.msra.mxu0 %v1673
        %1739 = vmatpush.msra.mxu0 %v1672
        %1740 = vmatpush.msra.mxu0 %v1671
        %1741 = vmatpush.msra.mxu0 %v1670
        %1742 = vmatpush.msra.mxu0 %v1669
        %1743 = vmatpush.msra.mxu0 %v1668
        %1744 = vmatpush.msra.mxu0 %v1667
        %1745 = vmatpush.msra.mxu0 %v1666
        %1746 = vmatpush.msra.mxu0 %v1665
        %1747 = vmatpush.msra.mxu0 %v1664
        %1748 = vmatmul.f32.gmra.mxu0 %v1644
        %v1749 = vpop.f32.mrf.mxu0
        %v1750 = vadd.f32 %v1690, %v1749
        %1751 = vmatmul.f32.gmra.mxu0 %v1645
        %v1752 = vpop.f32.mrf.mxu0
        %v1753 = vadd.f32 %v1690, %v1752
        %1754 = vmatmul.f32.gmra.mxu0 %v1646
        %v1755 = vpop.f32.mrf.mxu0
        %v1756 = vadd.f32 %v1690, %v1755
        %1757 = vmatmul.f32.gmra.mxu0 %v1647
        %v1758 = vpop.f32.mrf.mxu0
        %v1759 = vadd.f32 %v1690, %v1758
        %1760 = vmatmul.f32.gmra.mxu0 %v1648
        %v1761 = vpop.f32.mrf.mxu0
        %v1762 = vadd.f32 %v1690, %v1761
        %1763 = vmatmul.f32.gmra.mxu0 %v1649
        %v1764 = vpop.f32.mrf.mxu0
        %v1765 = vadd.f32 %v1690, %v1764
        %1766 = vmatmul.f32.gmra.mxu0 %v1650
        %v1767 = vpop.f32.mrf.mxu0
        %v1768 = vadd.f32 %v1690, %v1767
        %1769 = vmatmul.f32.gmra.mxu0 %v1651
        %v1770 = vpop.f32.mrf.mxu0
        %v1771 = vadd.f32 %v1690, %v1770
        %1772 = vmatmul.f32.gmra.mxu0 %v1652
        %v1773 = vpop.f32.mrf.mxu0
        %v1774 = vadd.f32 %v1690, %v1773
        %1775 = vmatmul.f32.gmra.mxu0 %v1653
        %v1776 = vpop.f32.mrf.mxu0
        %v1777 = vadd.f32 %v1690, %v1776
        %1778 = vmatmul.f32.gmra.mxu0 %v1654
        %v1779 = vpop.f32.mrf.mxu0
        %v1780 = vadd.f32 %v1690, %v1779
        %1781 = vmatmul.f32.gmra.mxu0 %v1655
        %v1782 = vpop.f32.mrf.mxu0
        %v1783 = vadd.f32 %v1690, %v1782
        %1784 = vmatmul.f32.gmra.mxu0 %v1656
        %v1785 = vpop.f32.mrf.mxu0
        %v1786 = vadd.f32 %v1690, %v1785
        %1787 = vmatmul.f32.gmra.mxu0 %v1657
        %v1788 = vpop.f32.mrf.mxu0
        %v1789 = vadd.f32 %v1690, %v1788
        %1790 = vmatmul.f32.gmra.mxu0 %v1658
        %v1791 = vpop.f32.mrf.mxu0
        %v1792 = vadd.f32 %v1690, %v1791
        %1793 = vmatmul.f32.gmra.mxu0 %v1659
        %v1794 = vpop.f32.mrf.mxu0
        %v1795 = vadd.f32 %v1690, %v1794
        %1796 = vmatmul.f32.gmra.mxu0 %v1660
        %v1797 = vpop.f32.mrf.mxu0
        %v1798 = vadd.f32 %v1690, %v1797
        %1799 = vmatmul.f32.gmra.mxu0 %v1661
        %v1800 = vpop.f32.mrf.mxu0
        %v1801 = vadd.f32 %v1690, %v1800
        %1802 = vmatmul.f32.gmra.mxu0 %v1662
        %v1803 = vpop.f32.mrf.mxu0
        %v1804 = vadd.f32 %v1690, %v1803
        %1805 = vmatmul.f32.gmra.mxu0 %v1663
        %v1806 = vpop.f32.mrf.mxu0
        %v1807 = vadd.f32 %v1690, %v1806
        %1808 = vdwg.mxu0
        %1809 = vmatpush.msra.mxu0 0.0
        %1810 = vmatpush.msra.mxu0 0.0
        %1811 = vmatpush.msra.mxu0 0.0
        %1812 = vmatpush.msra.mxu0 0.0
        %1813 = vmatpush.msra.mxu0 0.0
        %1814 = vmatpush.msra.mxu0 0.0
        %1815 = vmatpush.msra.mxu0 0.0
        %1816 = vmatpush.msra.mxu0 0.0
        %1817 = vmatpush.msra.mxu0 %v1687
        %1818 = vmatpush.msra.mxu0 %v1686
        %1819 = vmatpush.msra.mxu0 %v1685
        %1820 = vmatpush.msra.mxu0 %v1684
        %1821 = vmatpush.msra.mxu0 %v1683
        %1822 = vmatpush.msra.mxu0 %v1682
        %1823 = vmatpush.msra.mxu0 %v1681
        %1824 = vmatpush.msra.mxu0 %v1680
        %1825 = vmatmul.f32.gmra.mxu0 %v1692
        %v1826 = vpop.f32.mrf.mxu0
        %v1827 = vadd.f32 %v1750, %v1826
        %1828 = vmatmul.f32.gmra.mxu0 %v1694
        %v1829 = vpop.f32.mrf.mxu0
        %v1830 = vadd.f32 %v1753, %v1829
        %1831 = vmatmul.f32.gmra.mxu0 %v1696
        %v1832 = vpop.f32.mrf.mxu0
        %v1833 = vadd.f32 %v1756, %v1832
        %1834 = vmatmul.f32.gmra.mxu0 %v1698
        %v1835 = vpop.f32.mrf.mxu0
        %v1836 = vadd.f32 %v1759, %v1835
        %1837 = vmatmul.f32.gmra.mxu0 %v1700
        %v1838 = vpop.f32.mrf.mxu0
        %v1839 = vadd.f32 %v1762, %v1838
        %1840 = vmatmul.f32.gmra.mxu0 %v1702
        %v1841 = vpop.f32.mrf.mxu0
        %v1842 = vadd.f32 %v1765, %v1841
        %1843 = vmatmul.f32.gmra.mxu0 %v1704
        %v1844 = vpop.f32.mrf.mxu0
        %v1845 = vadd.f32 %v1768, %v1844
        %1846 = vmatmul.f32.gmra.mxu0 %v1706
        %v1847 = vpop.f32.mrf.mxu0
        %v1848 = vadd.f32 %v1771, %v1847
        %1849 = vmatmul.f32.gmra.mxu0 %v1708
        %v1850 = vpop.f32.mrf.mxu0
        %v1851 = vadd.f32 %v1774, %v1850
        %1852 = vmatmul.f32.gmra.mxu0 %v1710
        %v1853 = vpop.f32.mrf.mxu0
        %v1854 = vadd.f32 %v1777, %v1853
        %1855 = vmatmul.f32.gmra.mxu0 %v1712
        %v1856 = vpop.f32.mrf.mxu0
        %v1857 = vadd.f32 %v1780, %v1856
        %1858 = vmatmul.f32.gmra.mxu0 %v1714
        %v1859 = vpop.f32.mrf.mxu0
        %v1860 = vadd.f32 %v1783, %v1859
        %1861 = vmatmul.f32.gmra.mxu0 %v1716
        %v1862 = vpop.f32.mrf.mxu0
        %v1863 = vadd.f32 %v1786, %v1862
        %1864 = vmatmul.f32.gmra.mxu0 %v1718
        %v1865 = vpop.f32.mrf.mxu0
        %v1866 = vadd.f32 %v1789, %v1865
        %1867 = vmatmul.f32.gmra.mxu0 %v1720
        %v1868 = vpop.f32.mrf.mxu0
        %v1869 = vadd.f32 %v1792, %v1868
        %1870 = vmatmul.f32.gmra.mxu0 %v1722
        %v1871 = vpop.f32.mrf.mxu0
        %v1872 = vadd.f32 %v1795, %v1871
        %1873 = vmatmul.f32.gmra.mxu0 %v1724
        %v1874 = vpop.f32.mrf.mxu0
        %v1875 = vadd.f32 %v1798, %v1874
        %1876 = vmatmul.f32.gmra.mxu0 %v1726
        %v1877 = vpop.f32.mrf.mxu0
        %v1878 = vadd.f32 %v1801, %v1877
        %1879 = vmatmul.f32.gmra.mxu0 %v1728
        %v1880 = vpop.f32.mrf.mxu0
        %v1881 = vadd.f32 %v1804, %v1880
        %1882 = vmatmul.f32.gmra.mxu0 %v1730
        %v1883 = vpop.f32.mrf.mxu0
        %v1884 = vadd.f32 %v1807, %v1883
        %1885 = vdwg.mxu0
        %v1886 = vmax.f32 %v1827, 0.0
        %v1887 = vmax.f32 %v1830, 0.0
        %v1888 = vmax.f32 %v1833, 0.0
        %v1889 = vmax.f32 %v1836, 0.0
        %v1890 = vmax.f32 %v1839, 0.0
        %v1891 = vmax.f32 %v1842, 0.0
        %v1892 = vmax.f32 %v1845, 0.0
        %v1893 = vmax.f32 %v1848, 0.0
        %v1894 = vmax.f32 %v1851, 0.0
        %v1895 = vmax.f32 %v1854, 0.0
        %v1896 = vmax.f32 %v1857, 0.0
        %v1897 = vmax.f32 %v1860, 0.0
        %v1898 = vmax.f32 %v1863, 0.0
        %v1899 = vmax.f32 %v1866, 0.0
        %v1900 = vmax.f32 %v1869, 0.0
        %v1901 = vmax.f32 %v1872, 0.0
        %v1902 = vmax.f32 %v1875, 0.0
        %v1903 = vmax.f32 %v1878, 0.0
        %v1904 = vmax.f32 %v1881, 0.0
        %v1905 = vmax.f32 %v1884, 0.0
        %v1906 = vmul.f32 %v1886, %v469
        %v1907 = vmul.f32 %v1887, %v470
        %v1908 = vmul.f32 %v1888, %v471
        %v1909 = vmul.f32 %v1889, %v472
        %v1910 = vmul.f32 %v1890, %v473
        %v1911 = vmul.f32 %v1891, %v469
        %v1912 = vmul.f32 %v1892, %v470
        %v1913 = vmul.f32 %v1893, %v471
        %v1914 = vmul.f32 %v1894, %v472
        %v1915 = vmul.f32 %v1895, %v473
        %v1916 = vmul.f32 %v1896, %v469
        %v1917 = vmul.f32 %v1897, %v470
        %v1918 = vmul.f32 %v1898, %v471
        %v1919 = vmul.f32 %v1899, %v472
        %v1920 = vmul.f32 %v1900, %v473
        %v1921 = vmul.f32 %v1901, %v469
        %v1922 = vmul.f32 %v1902, %v470
        %v1923 = vmul.f32 %v1903, %v471
        %v1924 = vmul.f32 %v1904, %v472
        %v1925 = vmul.f32 %v1905, %v473
        %1926 = vst.msk [vmem:[#allocation4 + $0x1] sm:$0xff] %vm953, %v1906
        %1927 = vst.msk [vmem:[#allocation4 + $0x9] sm:$0xff] %vm953, %v1907
        %1928 = vst.msk [vmem:[#allocation4 + $0x11] sm:$0xff] %vm953, %v1908
        %1929 = vst.msk [vmem:[#allocation4 + $0x19] sm:$0xff] %vm953, %v1909
        %1930 = vst.msk [vmem:[#allocation4 + $0x21] sm:$0xff] %vm953, %v1910
        %1931 = vst.msk [vmem:[#allocation4 + $0x29] sm:$0xff] %vm953, %v1911
        %1932 = vst.msk [vmem:[#allocation4 + $0x31] sm:$0xff] %vm953, %v1912
        %1933 = vst.msk [vmem:[#allocation4 + $0x39] sm:$0xff] %vm953, %v1913
        %1934 = vst.msk [vmem:[#allocation4 + $0x41] sm:$0xff] %vm953, %v1914
        %1935 = vst.msk [vmem:[#allocation4 + $0x49] sm:$0xff] %vm953, %v1915
        %1936 = vst.msk [vmem:[#allocation4 + $0x51] sm:$0xff] %vm953, %v1916
        %1937 = vst.msk [vmem:[#allocation4 + $0x59] sm:$0xff] %vm953, %v1917
        %1938 = vst.msk [vmem:[#allocation4 + $0x61] sm:$0xff] %vm953, %v1918
        %1939 = vst.msk [vmem:[#allocation4 + $0x69] sm:$0xff] %vm953, %v1919
        %1940 = vst.msk [vmem:[#allocation4 + $0x71] sm:$0xff] %vm953, %v1920
        %1941 = vst.msk [vmem:[#allocation4 + $0x79] sm:$0xff] %vm953, %v1921
        %1942 = vst.msk [vmem:[#allocation4 + $0x81] sm:$0xff] %vm953, %v1922
        %1943 = vst.msk [vmem:[#allocation4 + $0x89] sm:$0xff] %vm953, %v1923
        %1944 = vst.msk [vmem:[#allocation4 + $0x91] sm:$0xff] %vm953, %v1924
        %1945 = vst.msk [vmem:[#allocation4 + $0x99] sm:$0xff] %vm953, %v1925
        %v1946 = vld [vmem:[#allocation4] sm:$0xff]
        %v1947 = vld [vmem:[#allocation4 + $0x8] sm:$0xff]
        %v1948 = vld [vmem:[#allocation4 + $0x10] sm:$0xff]
        %v1949 = vld [vmem:[#allocation4 + $0x18] sm:$0xff]
        %v1950 = vld [vmem:[#allocation4 + $0x20] sm:$0xff]
        %v1951 = vld [vmem:[#allocation4 + $0x28] sm:$0xff]
        %v1952 = vld [vmem:[#allocation4 + $0x30] sm:$0xff]
        %v1953 = vld [vmem:[#allocation4 + $0x38] sm:$0xff]
        %v1954 = vld [vmem:[#allocation4 + $0x40] sm:$0xff]
        %v1955 = vld [vmem:[#allocation4 + $0x48] sm:$0xff]
        %v1956 = vld [vmem:[#allocation4 + $0x50] sm:$0xff]
        %v1957 = vld [vmem:[#allocation4 + $0x58] sm:$0xff]
        %v1958 = vld [vmem:[#allocation4 + $0x60] sm:$0xff]
        %v1959 = vld [vmem:[#allocation4 + $0x68] sm:$0xff]
        %v1960 = vld [vmem:[#allocation4 + $0x70] sm:$0xff]
        %v1961 = vld [vmem:[#allocation4 + $0x78] sm:$0xff]
        %v1962 = vld [vmem:[#allocation4 + $0x80] sm:$0xff]
        %v1963 = vld [vmem:[#allocation4 + $0x88] sm:$0xff]
        %v1964 = vld [vmem:[#allocation4 + $0x90] sm:$0xff]
        %v1965 = vld [vmem:[#allocation4 + $0x98] sm:$0xff]
        %v1966 = vld [vmem:[#allocation4 + $0xa0] sm:$0x3]
        %v1988 = vrot.slane %v1946, 1
        %v1989 = vrot.slane %v1947, 1
        %v1990 = vsel %vm516, %v1988, %v1989
        %v1991 = vrot.slane %v1948, 1
        %v1992 = vsel %vm516, %v1989, %v1991
        %v1993 = vrot.slane %v1949, 1
        %v1994 = vsel %vm516, %v1991, %v1993
        %v1995 = vrot.slane %v1950, 1
        %v1996 = vsel %vm516, %v1993, %v1995
        %v1997 = vrot.slane %v1951, 1
        %v1998 = vsel %vm516, %v1995, %v1997
        %v1999 = vrot.slane %v1952, 1
        %v2000 = vsel %vm516, %v1997, %v1999
        %v2001 = vrot.slane %v1953, 1
        %v2002 = vsel %vm516, %v1999, %v2001
        %v2003 = vrot.slane %v1954, 1
        %v2004 = vsel %vm516, %v2001, %v2003
        %v2005 = vrot.slane %v1955, 1
        %v2006 = vsel %vm516, %v2003, %v2005
        %v2007 = vrot.slane %v1956, 1
        %v2008 = vsel %vm516, %v2005, %v2007
        %v2009 = vrot.slane %v1957, 1
        %v2010 = vsel %vm516, %v2007, %v2009
        %v2011 = vrot.slane %v1958, 1
        %v2012 = vsel %vm516, %v2009, %v2011
        %v2013 = vrot.slane %v1959, 1
        %v2014 = vsel %vm516, %v2011, %v2013
        %v2015 = vrot.slane %v1960, 1
        %v2016 = vsel %vm516, %v2013, %v2015
        %v2017 = vrot.slane %v1961, 1
        %v2018 = vsel %vm516, %v2015, %v2017
        %v2019 = vrot.slane %v1962, 1
        %v2020 = vsel %vm516, %v2017, %v2019
        %v2021 = vrot.slane %v1963, 1
        %v2022 = vsel %vm516, %v2019, %v2021
        %v2023 = vrot.slane %v1964, 1
        %v2024 = vsel %vm516, %v2021, %v2023
        %v2025 = vrot.slane %v1965, 1
        %v2026 = vsel %vm516, %v2023, %v2025
        %v2027 = vrot.slane %v1966, 1
        %v2028 = vsel %vm516, %v2025, %v2027
        %2029 = vrot.lane.b32.xlu0 %v1990, 64
        %v2030 = vpop.permute.xlu0 %2029
        %2031 = vrot.lane.b32.xlu0 %v1992, 64
        %v2032 = vpop.permute.xlu0 %2031
        %2033 = vrot.lane.b32.xlu0 %v1994, 64
        %v2034 = vpop.permute.xlu0 %2033
        %2035 = vrot.lane.b32.xlu0 %v1996, 64
        %v2036 = vpop.permute.xlu0 %2035
        %2037 = vrot.lane.b32.xlu0 %v1998, 64
        %v2038 = vpop.permute.xlu0 %2037
        %2039 = vrot.lane.b32.xlu0 %v2000, 64
        %v2040 = vpop.permute.xlu0 %2039
        %2041 = vrot.lane.b32.xlu0 %v2002, 64
        %v2042 = vpop.permute.xlu0 %2041
        %2043 = vrot.lane.b32.xlu0 %v2004, 64
        %v2044 = vpop.permute.xlu0 %2043
        %2045 = vrot.lane.b32.xlu0 %v2006, 64
        %v2046 = vpop.permute.xlu0 %2045
        %2047 = vrot.lane.b32.xlu0 %v2008, 64
        %v2048 = vpop.permute.xlu0 %2047
        %2049 = vrot.lane.b32.xlu0 %v2010, 64
        %v2050 = vpop.permute.xlu0 %2049
        %2051 = vrot.lane.b32.xlu0 %v2012, 64
        %v2052 = vpop.permute.xlu0 %2051
        %2053 = vrot.lane.b32.xlu0 %v2014, 64
        %v2054 = vpop.permute.xlu0 %2053
        %2055 = vrot.lane.b32.xlu0 %v2016, 64
        %v2056 = vpop.permute.xlu0 %2055
        %2057 = vrot.lane.b32.xlu0 %v2018, 64
        %v2058 = vpop.permute.xlu0 %2057
        %2059 = vrot.lane.b32.xlu0 %v2020, 64
        %v2060 = vpop.permute.xlu0 %2059
        %2061 = vrot.lane.b32.xlu0 %v2022, 64
        %v2062 = vpop.permute.xlu0 %2061
        %2063 = vrot.lane.b32.xlu0 %v2024, 64
        %v2064 = vpop.permute.xlu0 %2063
        %2065 = vrot.lane.b32.xlu0 %v2026, 64
        %v2066 = vpop.permute.xlu0 %2065
        %2067 = vrot.lane.b32.xlu0 %v2028, 64
        %v2068 = vpop.permute.xlu0 %2067
        %v2089 = vrot.slane %v1946, 2
        %v2090 = vrot.slane %v1947, 2
        %v2091 = vsel %vm618, %v2089, %v2090
        %v2092 = vrot.slane %v1948, 2
        %v2093 = vsel %vm618, %v2090, %v2092
        %v2094 = vrot.slane %v1949, 2
        %v2095 = vsel %vm618, %v2092, %v2094
        %v2096 = vrot.slane %v1950, 2
        %v2097 = vsel %vm618, %v2094, %v2096
        %v2098 = vrot.slane %v1951, 2
        %v2099 = vsel %vm618, %v2096, %v2098
        %v2100 = vrot.slane %v1952, 2
        %v2101 = vsel %vm618, %v2098, %v2100
        %v2102 = vrot.slane %v1953, 2
        %v2103 = vsel %vm618, %v2100, %v2102
        %v2104 = vrot.slane %v1954, 2
        %v2105 = vsel %vm618, %v2102, %v2104
        %v2106 = vrot.slane %v1955, 2
        %v2107 = vsel %vm618, %v2104, %v2106
        %v2108 = vrot.slane %v1956, 2
        %v2109 = vsel %vm618, %v2106, %v2108
        %v2110 = vrot.slane %v1957, 2
        %v2111 = vsel %vm618, %v2108, %v2110
        %v2112 = vrot.slane %v1958, 2
        %v2113 = vsel %vm618, %v2110, %v2112
        %v2114 = vrot.slane %v1959, 2
        %v2115 = vsel %vm618, %v2112, %v2114
        %v2116 = vrot.slane %v1960, 2
        %v2117 = vsel %vm618, %v2114, %v2116
        %v2118 = vrot.slane %v1961, 2
        %v2119 = vsel %vm618, %v2116, %v2118
        %v2120 = vrot.slane %v1962, 2
        %v2121 = vsel %vm618, %v2118, %v2120
        %v2122 = vrot.slane %v1963, 2
        %v2123 = vsel %vm618, %v2120, %v2122
        %v2124 = vrot.slane %v1964, 2
        %v2125 = vsel %vm618, %v2122, %v2124
        %v2126 = vrot.slane %v1965, 2
        %v2127 = vsel %vm618, %v2124, %v2126
        %v2128 = vrot.slane %v1966, 2
        %v2129 = vsel %vm618, %v2126, %v2128
        %v2130 = vsel %vm953, %v1946, %v2030
        %v2131 = vsel %vm953, %v1947, %v2032
        %v2132 = vsel %vm953, %v1948, %v2034
        %v2133 = vsel %vm953, %v1949, %v2036
        %v2134 = vsel %vm953, %v1950, %v2038
        %v2135 = vsel %vm953, %v1951, %v2040
        %v2136 = vsel %vm953, %v1952, %v2042
        %v2137 = vsel %vm953, %v1953, %v2044
        %v2138 = vsel %vm953, %v1954, %v2046
        %v2139 = vsel %vm953, %v1955, %v2048
        %v2140 = vsel %vm953, %v1956, %v2050
        %v2141 = vsel %vm953, %v1957, %v2052
        %v2142 = vsel %vm953, %v1958, %v2054
        %v2143 = vsel %vm953, %v1959, %v2056
        %v2144 = vsel %vm953, %v1960, %v2058
        %v2145 = vsel %vm953, %v1961, %v2060
        %v2146 = vsel %vm953, %v1962, %v2062
        %v2147 = vsel %vm953, %v1963, %v2064
        %v2148 = vsel %vm953, %v1964, %v2066
        %v2149 = vsel %vm953, %v1965, %v2068
        %v2150 = vld [vmem:[%s7] sm:$0xff]
        %v2151 = vld [vmem:[%s7 + $0x8] sm:$0xff]
        %v2152 = vld [vmem:[%s7 + $0x10] sm:$0xff]
        %v2153 = vld [vmem:[%s7 + $0x18] sm:$0xff]
        %v2154 = vld [vmem:[%s7 + $0x20] sm:$0xff]
        %v2155 = vld [vmem:[%s7 + $0x28] sm:$0xff]
        %v2156 = vld [vmem:[%s7 + $0x30] sm:$0xff]
        %v2157 = vld [vmem:[%s7 + $0x38] sm:$0xff]
        %v2158 = vld [vmem:[%s7 + $0x40] sm:$0xff]
        %v2159 = vld [vmem:[%s7 + $0x48] sm:$0xff]
        %v2160 = vld [vmem:[%s7 + $0x50] sm:$0xff]
        %v2161 = vld [vmem:[%s7 + $0x58] sm:$0xff]
        %v2162 = vld [vmem:[%s7 + $0x60] sm:$0xff]
        %v2163 = vld [vmem:[%s7 + $0x68] sm:$0xff]
        %v2164 = vld [vmem:[%s7 + $0x70] sm:$0xff]
        %v2165 = vld [vmem:[%s7 + $0x78] sm:$0xff]
        %v2166 = vld [vmem:[%s7 + $0x80] sm:$0xff]
        %v2167 = vld [vmem:[%s7 + $0x88] sm:$0xff]
        %v2168 = vld [vmem:[%s7 + $0x90] sm:$0xff]
        %v2169 = vld [vmem:[%s7 + $0x98] sm:$0xff]
        %v2170 = vld [vmem:[%s7 + $0xa0] sm:$0xff]
        %v2171 = vld [vmem:[%s7 + $0xa8] sm:$0xff]
        %v2172 = vld [vmem:[%s7 + $0xb0] sm:$0xff]
        %v2173 = vld [vmem:[%s7 + $0xb8] sm:$0xff]
        %v2174 = vld [vmem:[%s8] sm:$0x1]
        %v2176 = vperm.slane %v2174, 0
        %v2178 = vsel %vm953, %v2091, 0
        %v2180 = vsel %vm953, %v2093, 0
        %v2182 = vsel %vm953, %v2095, 0
        %v2184 = vsel %vm953, %v2097, 0
        %v2186 = vsel %vm953, %v2099, 0
        %v2188 = vsel %vm953, %v2101, 0
        %v2190 = vsel %vm953, %v2103, 0
        %v2192 = vsel %vm953, %v2105, 0
        %v2194 = vsel %vm953, %v2107, 0
        %v2196 = vsel %vm953, %v2109, 0
        %v2198 = vsel %vm953, %v2111, 0
        %v2200 = vsel %vm953, %v2113, 0
        %v2202 = vsel %vm953, %v2115, 0
        %v2204 = vsel %vm953, %v2117, 0
        %v2206 = vsel %vm953, %v2119, 0
        %v2208 = vsel %vm953, %v2121, 0
        %v2210 = vsel %vm953, %v2123, 0
        %v2212 = vsel %vm953, %v2125, 0
        %v2214 = vsel %vm953, %v2127, 0
        %v2216 = vsel %vm953, %v2129, 0
        %2218 = vmatpush.msra.mxu0 %v2165
        %2219 = vmatpush.msra.mxu0 %v2164
        %2220 = vmatpush.msra.mxu0 %v2163
        %2221 = vmatpush.msra.mxu0 %v2162
        %2222 = vmatpush.msra.mxu0 %v2161
        %2223 = vmatpush.msra.mxu0 %v2160
        %2224 = vmatpush.msra.mxu0 %v2159
        %2225 = vmatpush.msra.mxu0 %v2158
        %2226 = vmatpush.msra.mxu0 %v2157
        %2227 = vmatpush.msra.mxu0 %v2156
        %2228 = vmatpush.msra.mxu0 %v2155
        %2229 = vmatpush.msra.mxu0 %v2154
        %2230 = vmatpush.msra.mxu0 %v2153
        %2231 = vmatpush.msra.mxu0 %v2152
        %2232 = vmatpush.msra.mxu0 %v2151
        %2233 = vmatpush.msra.mxu0 %v2150
        %2234 = vmatmul.f32.gmra.mxu0 %v2130
        %v2235 = vpop.f32.mrf.mxu0
        %v2236 = vadd.f32 %v2176, %v2235
        %2237 = vmatmul.f32.gmra.mxu0 %v2131
        %v2238 = vpop.f32.mrf.mxu0
        %v2239 = vadd.f32 %v2176, %v2238
        %2240 = vmatmul.f32.gmra.mxu0 %v2132
        %v2241 = vpop.f32.mrf.mxu0
        %v2242 = vadd.f32 %v2176, %v2241
        %2243 = vmatmul.f32.gmra.mxu0 %v2133
        %v2244 = vpop.f32.mrf.mxu0
        %v2245 = vadd.f32 %v2176, %v2244
        %2246 = vmatmul.f32.gmra.mxu0 %v2134
        %v2247 = vpop.f32.mrf.mxu0
        %v2248 = vadd.f32 %v2176, %v2247
        %2249 = vmatmul.f32.gmra.mxu0 %v2135
        %v2250 = vpop.f32.mrf.mxu0
        %v2251 = vadd.f32 %v2176, %v2250
        %2252 = vmatmul.f32.gmra.mxu0 %v2136
        %v2253 = vpop.f32.mrf.mxu0
        %v2254 = vadd.f32 %v2176, %v2253
        %2255 = vmatmul.f32.gmra.mxu0 %v2137
        %v2256 = vpop.f32.mrf.mxu0
        %v2257 = vadd.f32 %v2176, %v2256
        %2258 = vmatmul.f32.gmra.mxu0 %v2138
        %v2259 = vpop.f32.mrf.mxu0
        %v2260 = vadd.f32 %v2176, %v2259
        %2261 = vmatmul.f32.gmra.mxu0 %v2139
        %v2262 = vpop.f32.mrf.mxu0
        %v2263 = vadd.f32 %v2176, %v2262
        %2264 = vmatmul.f32.gmra.mxu0 %v2140
        %v2265 = vpop.f32.mrf.mxu0
        %v2266 = vadd.f32 %v2176, %v2265
        %2267 = vmatmul.f32.gmra.mxu0 %v2141
        %v2268 = vpop.f32.mrf.mxu0
        %v2269 = vadd.f32 %v2176, %v2268
        %2270 = vmatmul.f32.gmra.mxu0 %v2142
        %v2271 = vpop.f32.mrf.mxu0
        %v2272 = vadd.f32 %v2176, %v2271
        %2273 = vmatmul.f32.gmra.mxu0 %v2143
        %v2274 = vpop.f32.mrf.mxu0
        %v2275 = vadd.f32 %v2176, %v2274
        %2276 = vmatmul.f32.gmra.mxu0 %v2144
        %v2277 = vpop.f32.mrf.mxu0
        %v2278 = vadd.f32 %v2176, %v2277
        %2279 = vmatmul.f32.gmra.mxu0 %v2145
        %v2280 = vpop.f32.mrf.mxu0
        %v2281 = vadd.f32 %v2176, %v2280
        %2282 = vmatmul.f32.gmra.mxu0 %v2146
        %v2283 = vpop.f32.mrf.mxu0
        %v2284 = vadd.f32 %v2176, %v2283
        %2285 = vmatmul.f32.gmra.mxu0 %v2147
        %v2286 = vpop.f32.mrf.mxu0
        %v2287 = vadd.f32 %v2176, %v2286
        %2288 = vmatmul.f32.gmra.mxu0 %v2148
        %v2289 = vpop.f32.mrf.mxu0
        %v2290 = vadd.f32 %v2176, %v2289
        %2291 = vmatmul.f32.gmra.mxu0 %v2149
        %v2292 = vpop.f32.mrf.mxu0
        %v2293 = vadd.f32 %v2176, %v2292
        %2294 = vdwg.mxu0
        %2295 = vmatpush.msra.mxu0 0.0
        %2296 = vmatpush.msra.mxu0 0.0
        %2297 = vmatpush.msra.mxu0 0.0
        %2298 = vmatpush.msra.mxu0 0.0
        %2299 = vmatpush.msra.mxu0 0.0
        %2300 = vmatpush.msra.mxu0 0.0
        %2301 = vmatpush.msra.mxu0 0.0
        %2302 = vmatpush.msra.mxu0 0.0
        %2303 = vmatpush.msra.mxu0 %v2173
        %2304 = vmatpush.msra.mxu0 %v2172
        %2305 = vmatpush.msra.mxu0 %v2171
        %2306 = vmatpush.msra.mxu0 %v2170
        %2307 = vmatpush.msra.mxu0 %v2169
        %2308 = vmatpush.msra.mxu0 %v2168
        %2309 = vmatpush.msra.mxu0 %v2167
        %2310 = vmatpush.msra.mxu0 %v2166
        %2311 = vmatmul.f32.gmra.mxu0 %v2178
        %v2312 = vpop.f32.mrf.mxu0
        %v2313 = vadd.f32 %v2236, %v2312
        %2314 = vmatmul.f32.gmra.mxu0 %v2180
        %v2315 = vpop.f32.mrf.mxu0
        %v2316 = vadd.f32 %v2239, %v2315
        %2317 = vmatmul.f32.gmra.mxu0 %v2182
        %v2318 = vpop.f32.mrf.mxu0
        %v2319 = vadd.f32 %v2242, %v2318
        %2320 = vmatmul.f32.gmra.mxu0 %v2184
        %v2321 = vpop.f32.mrf.mxu0
        %v2322 = vadd.f32 %v2245, %v2321
        %2323 = vmatmul.f32.gmra.mxu0 %v2186
        %v2324 = vpop.f32.mrf.mxu0
        %v2325 = vadd.f32 %v2248, %v2324
        %2326 = vmatmul.f32.gmra.mxu0 %v2188
        %v2327 = vpop.f32.mrf.mxu0
        %v2328 = vadd.f32 %v2251, %v2327
        %2329 = vmatmul.f32.gmra.mxu0 %v2190
        %v2330 = vpop.f32.mrf.mxu0
        %v2331 = vadd.f32 %v2254, %v2330
        %2332 = vmatmul.f32.gmra.mxu0 %v2192
        %v2333 = vpop.f32.mrf.mxu0
        %v2334 = vadd.f32 %v2257, %v2333
        %2335 = vmatmul.f32.gmra.mxu0 %v2194
        %v2336 = vpop.f32.mrf.mxu0
        %v2337 = vadd.f32 %v2260, %v2336
        %2338 = vmatmul.f32.gmra.mxu0 %v2196
        %v2339 = vpop.f32.mrf.mxu0
        %v2340 = vadd.f32 %v2263, %v2339
        %2341 = vmatmul.f32.gmra.mxu0 %v2198
        %v2342 = vpop.f32.mrf.mxu0
        %v2343 = vadd.f32 %v2266, %v2342
        %2344 = vmatmul.f32.gmra.mxu0 %v2200
        %v2345 = vpop.f32.mrf.mxu0
        %v2346 = vadd.f32 %v2269, %v2345
        %2347 = vmatmul.f32.gmra.mxu0 %v2202
        %v2348 = vpop.f32.mrf.mxu0
        %v2349 = vadd.f32 %v2272, %v2348
        %2350 = vmatmul.f32.gmra.mxu0 %v2204
        %v2351 = vpop.f32.mrf.mxu0
        %v2352 = vadd.f32 %v2275, %v2351
        %2353 = vmatmul.f32.gmra.mxu0 %v2206
        %v2354 = vpop.f32.mrf.mxu0
        %v2355 = vadd.f32 %v2278, %v2354
        %2356 = vmatmul.f32.gmra.mxu0 %v2208
        %v2357 = vpop.f32.mrf.mxu0
        %v2358 = vadd.f32 %v2281, %v2357
        %2359 = vmatmul.f32.gmra.mxu0 %v2210
        %v2360 = vpop.f32.mrf.mxu0
        %v2361 = vadd.f32 %v2284, %v2360
        %2362 = vmatmul.f32.gmra.mxu0 %v2212
        %v2363 = vpop.f32.mrf.mxu0
        %v2364 = vadd.f32 %v2287, %v2363
        %2365 = vmatmul.f32.gmra.mxu0 %v2214
        %v2366 = vpop.f32.mrf.mxu0
        %v2367 = vadd.f32 %v2290, %v2366
        %2368 = vmatmul.f32.gmra.mxu0 %v2216
        %v2369 = vpop.f32.mrf.mxu0
        %v2370 = vadd.f32 %v2293, %v2369
        %2371 = vdwg.mxu0
        %v2372 = vmax.f32 %v2313, 0.0
        %v2373 = vmax.f32 %v2316, 0.0
        %v2374 = vmax.f32 %v2319, 0.0
        %v2375 = vmax.f32 %v2322, 0.0
        %v2376 = vmax.f32 %v2325, 0.0
        %v2377 = vmax.f32 %v2328, 0.0
        %v2378 = vmax.f32 %v2331, 0.0
        %v2379 = vmax.f32 %v2334, 0.0
        %v2380 = vmax.f32 %v2337, 0.0
        %v2381 = vmax.f32 %v2340, 0.0
        %v2382 = vmax.f32 %v2343, 0.0
        %v2383 = vmax.f32 %v2346, 0.0
        %v2384 = vmax.f32 %v2349, 0.0
        %v2385 = vmax.f32 %v2352, 0.0
        %v2386 = vmax.f32 %v2355, 0.0
        %v2387 = vmax.f32 %v2358, 0.0
        %v2388 = vmax.f32 %v2361, 0.0
        %v2389 = vmax.f32 %v2364, 0.0
        %v2390 = vmax.f32 %v2367, 0.0
        %v2391 = vmax.f32 %v2370, 0.0
        %2392 = vxpose.xlu0.b32.start [1/16] %v2372, 128
        %2393 = vxpose.xlu0.b32.cont [2/16] %v2373, 128
        %2394 = vxpose.xlu0.b32.cont [3/16] %v2374, 128
        %2395 = vxpose.xlu0.b32.cont [4/16] %v2375, 128
        %2396 = vxpose.xlu0.b32.cont [5/16] %v2376, 128
        %2397 = vxpose.xlu0.b32.cont [6/16] 0.0, 128
        %2398 = vxpose.xlu0.b32.cont [7/16] 0.0, 128
        %2399 = vxpose.xlu0.b32.cont [8/16] 0.0, 128
        %2400 = vxpose.xlu0.b32.cont [9/16] 0.0, 128
        %2401 = vxpose.xlu0.b32.cont [10/16] 0.0, 128
        %2402 = vxpose.xlu0.b32.cont [11/16] 0.0, 128
        %2403 = vxpose.xlu0.b32.cont [12/16] 0.0, 128
        %2404 = vxpose.xlu0.b32.cont [13/16] 0.0, 128
        %2405 = vxpose.xlu0.b32.cont [14/16] 0.0, 128
        %2406 = vxpose.xlu0.b32.cont [15/16] 0.0, 128
        %2407 = vxpose.xlu0.b32.end [16/16] 0.0, 128
        %v2408 = vpop.trf.xlu0
        %v2409 = vpop.trf.xlu0
        %v2410 = vpop.trf.xlu0
        %v2411 = vpop.trf.xlu0
        %v2412 = vpop.trf.xlu0
        %v2413 = vpop.trf.xlu0
        %v2414 = vpop.trf.xlu0
        %v2415 = vpop.trf.xlu0
        %v2416 = vpop.trf.xlu0
        %v2417 = vpop.trf.xlu0
        %v2418 = vpop.trf.xlu0
        %v2419 = vpop.trf.xlu0
        %v2420 = vpop.trf.xlu0
        %v2421 = vpop.trf.xlu0
        %v2422 = vpop.trf.xlu0
        %v2423 = vpop.trf.xlu0
        %2424 = vxpose.xlu0.b32.start [1/16] %v2377, 128
        %2425 = vxpose.xlu0.b32.cont [2/16] %v2378, 128
        %2426 = vxpose.xlu0.b32.cont [3/16] %v2379, 128
        %2427 = vxpose.xlu0.b32.cont [4/16] %v2380, 128
        %2428 = vxpose.xlu0.b32.cont [5/16] %v2381, 128
        %2429 = vxpose.xlu0.b32.cont [6/16] 0.0, 128
        %2430 = vxpose.xlu0.b32.cont [7/16] 0.0, 128
        %2431 = vxpose.xlu0.b32.cont [8/16] 0.0, 128
        %2432 = vxpose.xlu0.b32.cont [9/16] 0.0, 128
        %2433 = vxpose.xlu0.b32.cont [10/16] 0.0, 128
        %2434 = vxpose.xlu0.b32.cont [11/16] 0.0, 128
        %2435 = vxpose.xlu0.b32.cont [12/16] 0.0, 128
        %2436 = vxpose.xlu0.b32.cont [13/16] 0.0, 128
        %2437 = vxpose.xlu0.b32.cont [14/16] 0.0, 128
        %2438 = vxpose.xlu0.b32.cont [15/16] 0.0, 128
        %2439 = vxpose.xlu0.b32.end [16/16] 0.0, 128
        %v2440 = vpop.trf.xlu0
        %v2441 = vpop.trf.xlu0
        %v2442 = vpop.trf.xlu0
        %v2443 = vpop.trf.xlu0
        %v2444 = vpop.trf.xlu0
        %v2445 = vpop.trf.xlu0
        %v2446 = vpop.trf.xlu0
        %v2447 = vpop.trf.xlu0
        %v2448 = vpop.trf.xlu0
        %v2449 = vpop.trf.xlu0
        %v2450 = vpop.trf.xlu0
        %v2451 = vpop.trf.xlu0
        %v2452 = vpop.trf.xlu0
        %v2453 = vpop.trf.xlu0
        %v2454 = vpop.trf.xlu0
        %v2455 = vpop.trf.xlu0
        %2456 = vxpose.xlu0.b32.start [1/16] %v2382, 128
        %2457 = vxpose.xlu0.b32.cont [2/16] %v2383, 128
        %2458 = vxpose.xlu0.b32.cont [3/16] %v2384, 128
        %2459 = vxpose.xlu0.b32.cont [4/16] %v2385, 128
        %2460 = vxpose.xlu0.b32.cont [5/16] %v2386, 128
        %2461 = vxpose.xlu0.b32.cont [6/16] 0.0, 128
        %2462 = vxpose.xlu0.b32.cont [7/16] 0.0, 128
        %2463 = vxpose.xlu0.b32.cont [8/16] 0.0, 128
        %2464 = vxpose.xlu0.b32.cont [9/16] 0.0, 128
        %2465 = vxpose.xlu0.b32.cont [10/16] 0.0, 128
        %2466 = vxpose.xlu0.b32.cont [11/16] 0.0, 128
        %2467 = vxpose.xlu0.b32.cont [12/16] 0.0, 128
        %2468 = vxpose.xlu0.b32.cont [13/16] 0.0, 128
        %2469 = vxpose.xlu0.b32.cont [14/16] 0.0, 128
        %2470 = vxpose.xlu0.b32.cont [15/16] 0.0, 128
        %2471 = vxpose.xlu0.b32.end [16/16] 0.0, 128
        %v2472 = vpop.trf.xlu0
        %v2473 = vpop.trf.xlu0
        %v2474 = vpop.trf.xlu0
        %v2475 = vpop.trf.xlu0
        %v2476 = vpop.trf.xlu0
        %v2477 = vpop.trf.xlu0
        %v2478 = vpop.trf.xlu0
        %v2479 = vpop.trf.xlu0
        %v2480 = vpop.trf.xlu0
        %v2481 = vpop.trf.xlu0
        %v2482 = vpop.trf.xlu0
        %v2483 = vpop.trf.xlu0
        %v2484 = vpop.trf.xlu0
        %v2485 = vpop.trf.xlu0
        %v2486 = vpop.trf.xlu0
        %v2487 = vpop.trf.xlu0
        %2488 = vxpose.xlu0.b32.start [1/16] %v2387, 128
        %2489 = vxpose.xlu0.b32.cont [2/16] %v2388, 128
        %2490 = vxpose.xlu0.b32.cont [3/16] %v2389, 128
        %2491 = vxpose.xlu0.b32.cont [4/16] %v2390, 128
        %2492 = vxpose.xlu0.b32.cont [5/16] %v2391, 128
        %2493 = vxpose.xlu0.b32.cont [6/16] 0.0, 128
        %2494 = vxpose.xlu0.b32.cont [7/16] 0.0, 128
        %2495 = vxpose.xlu0.b32.cont [8/16] 0.0, 128
        %2496 = vxpose.xlu0.b32.cont [9/16] 0.0, 128
        %2497 = vxpose.xlu0.b32.cont [10/16] 0.0, 128
        %2498 = vxpose.xlu0.b32.cont [11/16] 0.0, 128
        %2499 = vxpose.xlu0.b32.cont [12/16] 0.0, 128
        %2500 = vxpose.xlu0.b32.cont [13/16] 0.0, 128
        %2501 = vxpose.xlu0.b32.cont [14/16] 0.0, 128
        %2502 = vxpose.xlu0.b32.cont [15/16] 0.0, 128
        %2503 = vxpose.xlu0.b32.end [16/16] 0.0, 128
        %v2504 = vpop.trf.xlu0
        %v2505 = vpop.trf.xlu0
        %v2506 = vpop.trf.xlu0
        %v2507 = vpop.trf.xlu0
        %v2508 = vpop.trf.xlu0
        %v2509 = vpop.trf.xlu0
        %v2510 = vpop.trf.xlu0
        %v2511 = vpop.trf.xlu0
        %v2512 = vpop.trf.xlu0
        %v2513 = vpop.trf.xlu0
        %v2514 = vpop.trf.xlu0
        %v2515 = vpop.trf.xlu0
        %v2516 = vpop.trf.xlu0
        %v2517 = vpop.trf.xlu0
        %v2518 = vpop.trf.xlu0
        %v2519 = vpop.trf.xlu0
        %vm2520 = vcmask 277504
        %2521 = vst.msk [vmem:[%s356] sm:$0xff] %vm2520, %v2408
        %2522 = vst.msk [vmem:[%s356 + $0x8] sm:$0xff] %vm2520, %v2409
        %2523 = vst.msk [vmem:[%s356 + $0x10] sm:$0xff] %vm2520, %v2410
        %2524 = vst.msk [vmem:[%s356 + $0x18] sm:$0xff] %vm2520, %v2411
        %2525 = vst.msk [vmem:[%s356 + $0x20] sm:$0xff] %vm2520, %v2440
        %2526 = vst.msk [vmem:[%s356 + $0x28] sm:$0xff] %vm2520, %v2441
        %2527 = vst.msk [vmem:[%s356 + $0x30] sm:$0xff] %vm2520, %v2442
        %2528 = vst.msk [vmem:[%s356 + $0x38] sm:$0xff] %vm2520, %v2443
        %2529 = vst.msk [vmem:[%s356 + $0x40] sm:$0xff] %vm2520, %v2472
        %2530 = vst.msk [vmem:[%s356 + $0x48] sm:$0xff] %vm2520, %v2473
        %2531 = vst.msk [vmem:[%s356 + $0x50] sm:$0xff] %vm2520, %v2474
        %2532 = vst.msk [vmem:[%s356 + $0x58] sm:$0xff] %vm2520, %v2475
        %2533 = vst.msk [vmem:[%s356 + $0x60] sm:$0xff] %vm2520, %v2504
        %2534 = vst.msk [vmem:[%s356 + $0x68] sm:$0xff] %vm2520, %v2505
        %2535 = vst.msk [vmem:[%s356 + $0x70] sm:$0xff] %vm2520, %v2506
        %2536 = vst.msk [vmem:[%s356 + $0x78] sm:$0xff] %vm2520, %v2507
        %s2537 = smul.u32 4, %s21
        %p2538 = scmp.lt.s32.totalorder %s2537, 7
        %s2539 = scalar_select %p2538, %s2537, 7
        %s2540 = smul.addr %s2539, 4
        %s2541 = smul.addr %s2540, 8
        %s2542 = scalar_lea.vmem %s9, %s2541
        // Predicated region
        $region61: #{self_info_encoder.1} parent=55 // pred_check
          %p2543 = pneg %p233
        $region62: #{self_info_encoder.1} parent=55 // pred_check_branch
          %2545 = sbr.rel (%p2543) target = $region64
        $region63: #{self_info_encoder.1} parent=55 // pred_region
          %s2546 = smul.u32 4, %s21
        $region64: #{self_info_encoder.1} parent=55 // pred_fallthru
          _
      $region56: #{self_info_encoder.1} parent=5 // pred_fallthru
        _
      %p2547 = scmp.le.s32.totalorder 2, %s16
      // Predicated region
      $region65: #{self_info_encoder.1} parent=5 // pred_check
        %p2548 = pneg %p2547
      $region66: #{self_info_encoder.1} parent=5 // pred_check_branch
        %2550 = sbr.rel (%p2548) target = $region68
      $region67: #{self_info_encoder.1} parent=5 // pred_region
        %s2551 = ssub.s32 %s16, 2
        // Predicated region
        $region69: #{self_info_encoder.1} parent=67 // pred_check
          %p2552 = pneg %p239
        $region70: #{self_info_encoder.1} parent=67 // pred_check_branch
          %2554 = sbr.rel (%p2552) target = $region72
        $region71: #{self_info_encoder.1} parent=67 // pred_region
          %s2555 = smul.u32 4, %s22
          %p2556 = scmp.lt.s32.totalorder %s2555, 7
          %s2557 = scalar_select %p2556, %s2555, 7
          %s2558 = smul.addr %s2557, 4
          %s2559 = smul.addr %s2558, 8
          %s2560 = scalar_lea.vmem %s9, %s2559
        $region72: #{self_info_encoder.1} parent=67 // pred_fallthru
          _
      $region68: #{self_info_encoder.1} parent=5 // pred_fallthru
        _
    $region6: #{self_info_encoder.1} parent=1 // loop_footer
      %s20 = sadd.s32 1, %s16
    $region7: #{self_info_encoder.1} parent=1 // loop_footer_branch
      %15 = sbr.rel target = $region3
    $region8: #{self_info_encoder.1} parent=1 // loop_exit
      _
    %2561 = vsyncpa [#allocation7], 1
    %s2562 = scalar_lea.sflag [#allocation7], 1
    %2563 = vsyncpa %s2562, 1

</llo_original>
